<compile_context>
chip_gen: v7x
topology: tpu7x:2x2x1
jax: 0.10.0
libtpu: 0.0.40
codegen_flags: <defaults>
</compile_context>

<pallas_src>
import functools
import math

import jax
import jax.numpy as jnp
from jax.experimental import pallas as pl
from jax.experimental.pallas import tpu as pltpu

MIN_NORM = 1e-15
EPS_F32 = 4e-3  # PoincareBall.eps[torch.float32]


# ----------------------------------------------------------------------------
# Pure-JAX PoincareBall math (reference + wrapper-side precompute)
# ----------------------------------------------------------------------------

def _artanh(x):
    x = jnp.clip(x, -1.0 + 1e-15, 1.0 - 1e-15)
    return 0.5 * (jnp.log1p(x) - jnp.log1p(-x))


def _norm_last(x):
    return jnp.maximum(jnp.sqrt(jnp.sum(x * x, axis=-1, keepdims=True)), MIN_NORM)


def _proj(x, c):
    norm = _norm_last(x)
    maxnorm = (1.0 - EPS_F32) / math.sqrt(c)
    return jnp.where(norm > maxnorm, x / norm * maxnorm, x)


def _expmap0(u, c):
    sqrt_c = math.sqrt(c)
    u_norm = _norm_last(u)
    return jnp.tanh(sqrt_c * u_norm) * u / (sqrt_c * u_norm)


def _logmap0(p, c):
    sqrt_c = math.sqrt(c)
    p_norm = _norm_last(p)
    return (1.0 / sqrt_c) * _artanh(sqrt_c * p_norm) / p_norm * p


def _mobius_add(x, y, c):
    x2 = jnp.sum(x * x, axis=-1, keepdims=True)
    y2 = jnp.sum(y * y, axis=-1, keepdims=True)
    xy = jnp.sum(x * y, axis=-1, keepdims=True)
    num = (1.0 + 2.0 * c * xy + c * y2) * x + (1.0 - c * x2) * y
    denom = 1.0 + 2.0 * c * xy + (c ** 2) * x2 * y2
    return num / jnp.maximum(denom, MIN_NORM)


def _mobius_matvec(w, x, c):
    sqrt_c = math.sqrt(c)
    x_norm = _norm_last(x)
    mx = jnp.dot(x, w.T, precision=jax.lax.Precision.HIGHEST)
    mx_norm = _norm_last(mx)
    res_c = jnp.tanh(mx_norm / x_norm * _artanh(sqrt_c * x_norm)) * mx / (
        mx_norm * sqrt_c)
    all_zero = jnp.sum(jnp.abs(mx), axis=-1, keepdims=True) == 0.0
    return jnp.where(all_zero, jnp.zeros_like(res_c), res_c)


def reference_forward(x, adj, weight, bias, c_in, c_out):
    mv = _mobius_matvec(weight, x, c_in)
    res = _proj(mv, c_in)
    hyp_bias = _proj(_expmap0(bias.reshape(1, -1), c_in), c_in)
    res = _proj(_mobius_add(res, hyp_bias, c_in), c_in)
    x_tangent = _logmap0(res, c_in)
    support_t = jnp.dot(adj, x_tangent, precision=jax.lax.Precision.HIGHEST)
    h = _proj(_expmap0(support_t, c_in), c_in)
    xt = jax.nn.relu(_logmap0(h, c_in))
    return _proj(_expmap0(xt, c_out), c_out)


# ----------------------------------------------------------------------------
# In-kernel helpers (analytic norms, pl.reciprocal for clamped divides)
# ----------------------------------------------------------------------------

def _krecip(x, approx):
    return pl.reciprocal(x, approx=approx)


def _knorm(x):
    return jnp.maximum(jnp.sqrt(jnp.sum(x * x, axis=-1, keepdims=True)), MIN_NORM)


def _kproj_with_norm(x, x_norm, c, approx):
    """proj onto the ball given a (possibly analytic) row norm; returns the
    post-proj norm so callers can reuse it instead of redoing a reduction."""
    maxnorm = (1.0 - EPS_F32) / math.sqrt(c)
    clip = x_norm > maxnorm
    scale = jnp.where(clip, maxnorm * _krecip(x_norm, approx), 1.0)
    return x * scale, jnp.where(clip, maxnorm, x_norm)


def _kexpmap0_proj_with_norm(u, c, approx):
    """Fused expmap0 -> proj.  |expmap0(u)| = tanh(sqrt_c*|u|)/sqrt_c, so proj
    reduces to clamping tanh() at (1 - eps): no second norm reduction."""
    sqrt_c = math.sqrt(c)
    u_norm = _knorm(u)
    gamma = jnp.minimum(jnp.tanh(sqrt_c * u_norm), 1.0 - EPS_F32)
    y = (gamma * _krecip(sqrt_c * u_norm, approx)) * u
    return y, gamma * (1.0 / sqrt_c)


def _klogmap0_from_norm(p, p_norm, c, approx):
    sqrt_c = math.sqrt(c)
    return (_artanh(sqrt_c * p_norm) * _krecip(sqrt_c * p_norm, approx)) * p


def _kmobius_add_bias(x, y, y2, c, approx):
    """mobius_add(x, hyp_bias): y is the loop-invariant (1, F) bias row and
    y2 = sum(y*y) is a precomputed SMEM scalar (one less XLU reduction)."""
    x2 = jnp.sum(x * x, axis=-1, keepdims=True)
    xy = jnp.sum(x * y, axis=-1, keepdims=True)
    num = (1.0 + 2.0 * c * xy + c * y2) * x + (1.0 - c * x2) * y
    denom = 1.0 + 2.0 * c * xy + (c ** 2) * x2 * y2
    return num * _krecip(jnp.maximum(denom, MIN_NORM), approx)


def _kmobius_matvec_t(x, w_t, c, approx, mxu_dtype=None):
    """mobius_matvec with a pre-transposed weight (F_in, F_out).  Returns the
    result and its analytic norm tanh(.)/sqrt_c (saves a reduction + sqrt);
    the all_zero test reuses the squared-sum instead of a separate abs-sum."""
    sqrt_c = math.sqrt(c)
    x_norm = _knorm(x)
    if mxu_dtype is not None:
        mx = jnp.dot(x.astype(mxu_dtype), w_t.astype(mxu_dtype),
                     preferred_element_type=jnp.float32)
    else:
        mx = jnp.dot(x, w_t, preferred_element_type=jnp.float32)
    mx_sq = jnp.sum(mx * mx, axis=-1, keepdims=True)
    mx_norm = jnp.maximum(jnp.sqrt(mx_sq), MIN_NORM)
    ratio = mx_norm * _krecip(x_norm, approx)
    gamma = jnp.tanh(ratio * _artanh(sqrt_c * x_norm))        # in [0, 1)
    res = (gamma * _krecip(mx_norm * sqrt_c, approx)) * mx
    all_zero = mx_sq == 0.0
    res = jnp.where(all_zero, jnp.zeros_like(res), res)
    res_norm = jnp.where(all_zero, MIN_NORM,
                         jnp.maximum(gamma * (1.0 / sqrt_c), MIN_NORM))
    return res, res_norm


# ----------------------------------------------------------------------------
# Stage A: HypLinear + logmap0, tiled over node rows
# ----------------------------------------------------------------------------

def hyplinear_logmap_kernel(x_ref, wt_ref, hb_ref, y2_ref, xt_ref, *,
                            c_in, approx, mxu_dtype):
    x = x_ref[...]           # (TILE_ROWS, F_in_p) f32
    w_t = wt_ref[...]        # (F_in_p, F_out_p) f32, pre-transposed in wrapper
    hyp_bias = hb_ref[...]   # (1, F_out_p) f32, precomputed proj(expmap0(bias))
    y2 = y2_ref[0, 0]        # SMEM scalar: sum(hyp_bias**2)

    res, res_norm = _kmobius_matvec_t(x, w_t, c_in, approx, mxu_dtype)
    res, _ = _kproj_with_norm(res, res_norm, c_in, approx)
    added = _kmobius_add_bias(res, hyp_bias, y2, c_in, approx)
    res, res_norm = _kproj_with_norm(added, _knorm(added), c_in, approx)
    # HypAgg's logmap0 is hoisted here so it runs once per node row, not once
    # per adjacency tile in stage B; written directly in the aggregation dtype.
    xt_ref[...] = _klogmap0_from_norm(res, res_norm, c_in, approx).astype(
        xt_ref.dtype)


# ----------------------------------------------------------------------------
# Stage B: tiled aggregation (adj @ x_tangent) + expmap0/proj + HypAct
# ----------------------------------------------------------------------------

def agg_act_kernel(adj_ref, xt_ref, out_ref, *, c_in, c_out, approx,
                   xt_resident, tile_k):
    k = pl.program_id(1)

    @pl.when(k == 0)
    def _():
        # Accumulate directly into the resident f32 output block (its block
        # index ignores k) -- no separate VMEM accumulator scratch.
        out_ref[...] = jnp.zeros_like(out_ref)

    a = adj_ref[...]                               # (TILE_M, TILE_K)
    if xt_resident:
        # x_tangent was DMA'd once (constant block index); slice the K tile.
        start = pl.multiple_of(k * tile_k, tile_k)
        xt = xt_ref[pl.ds(start, tile_k), :]
    else:
        xt = xt_ref[...]                           # (TILE_K, F_out_p)
    out_ref[...] += jnp.dot(a, xt, preferred_element_type=jnp.float32)

    @pl.when(k == pl.num_programs(1) - 1)
    def _():
        support_t = out_ref[...]
        # HypAgg epilogue: expmap0 + proj (fused), applied only after the full
        # K reduction -- applying it per partial sum would be wrong.
        h, h_norm = _kexpmap0_proj_with_norm(support_t, c_in, approx)
        # HypAct: relu(logmap0) -> proj_tan0 (identity) -> expmap0 -> proj.
        t = jnp.maximum(_klogmap0_from_norm(h, h_norm, c_in, approx), 0.0)
        out, _ = _kexpmap0_proj_with_norm(t, c_out, approx)
        out_ref[...] = out.astype(out_ref.dtype)


# ----------------------------------------------------------------------------
# Wrapper
# ----------------------------------------------------------------------------

def _round_up(x, m):
    return (x + m - 1) // m * m


def _pow2_floor(v):
    v = int(v)
    return 1 << max(0, v.bit_length() - 1)


def hyperbolic_graph_convolution(
    x, adj, weight, bias, c_in, c_out, *,
    tile_rows=512,                 # stage A node-row tile
    tile_m=512,                    # stage B output-row tile (adj rows)
    tile_k=512,                    # stage B reduction tile (adj cols)
    adj_dtype=jnp.bfloat16,        # bf16 adj/x_tangent: halves Stage B HBM bytes
    approx_recip=True,             # EUP approximate reciprocal for clamped divides
    linear_mxu_dtype=None,         # e.g. jnp.bfloat16 on v6e/v7x for F >= 512
    xt_resident_budget_bytes=8 * 1024 * 1024,
    vmem_limit_bytes=32 * 1024 * 1024,
):
    """Forward of HyperbolicGraphConvolution (use_att=False, dropout=0).
    Returns (h, adj) like the PyTorch module."""
    n, f_in = x.shape
    f_out = weight.shape[0]
    f32 = jnp.float32
    c_in = float(c_in)
    c_out = float(c_out)

    # Lane-dense feature padding (padded lanes are zero -> inert in every
    # reduction / matmul used here).
    f_in_p = _round_up(f_in, 128)
    f_out_p = _round_up(f_out, 128)

    # ---- tile selection -------------------------------------------------
    # Power-of-two tiles so n_pad = round_up(N, max_tile) is divided by every
    # tile (no tile_k = n_pad fallback => bounded VMEM on v7x's 64 MiB).
    n8 = _round_up(n, 8)
    n_cap = max(16, 1 << max(0, (n8 - 1).bit_length()))   # next pow2 >= n8
    tile_rows = max(16, min(_pow2_floor(tile_rows), n_cap))
    tile_m = max(16, min(_pow2_floor(tile_m), n_cap))
    tile_k = max(128, min(_pow2_floor(tile_k), max(128, n_cap)))
    n_pad = _round_up(n8, max(tile_rows, tile_m, tile_k))
    # v7x megacore: make sure each 'parallel' grid axis has >= 2 steps so both
    # TensorCores are used (harmless single-step overhead on v5e/v6e).
    if n_pad // tile_rows < 2 and tile_rows > 16:
        tile_rows //= 2
    if n_pad // tile_m < 2 and tile_m > 16:
        tile_m //= 2

    # ---- wrapper-side precompute -----------------------------------------
    xp = jnp.zeros((n_pad, f_in_p), f32).at[:n, :f_in].set(x.astype(f32))
    # Build the padded adjacency directly in adj_dtype (no f32 N^2 intermediate).
    adjp = jnp.zeros((n_pad, n_pad), adj_dtype).at[:n, :n].set(
        adj.astype(adj_dtype))
    # Pre-transpose the weight once (no in-kernel XLU transpose).
    wt = jnp.zeros((f_in_p, f_out_p), f32).at[:f_in, :f_out].set(
        weight.astype(f32).T)
    # Hoist the loop-invariant hyperbolic bias proj(expmap0(proj_tan0(bias)))
    # and its squared norm (SMEM scalar -> one less XLU reduction per tile).
    hyp_bias = _proj(_expmap0(bias.reshape(1, f_out).astype(f32), c_in), c_in)
    hbp = jnp.zeros((1, f_out_p), f32).at[:, :f_out].set(hyp_bias)
    y2 = jnp.sum(hyp_bias * hyp_bias).reshape(1, 1).astype(f32)

    xt_dtype = adj_dtype   # x_tangent feeds the MXU alongside adj

    # ---- Stage A: HypLinear + logmap0, grid over node-row tiles -----------
    xt = pl.pallas_call(
        functools.partial(hyplinear_logmap_kernel, c_in=c_in,
                          approx=approx_recip, mxu_dtype=linear_mxu_dtype),
        out_shape=jax.ShapeDtypeStruct((n_pad, f_out_p), xt_dtype),
        grid_spec=pltpu.PrefetchScalarGridSpec(
            num_scalar_prefetch=0,
            grid=(n_pad // tile_rows,),
            in_specs=[
                pl.BlockSpec((tile_rows, f_in_p), lambda i: (i, 0)),
                pl.BlockSpec((f_in_p, f_out_p), lambda i: (0, 0)),
                pl.BlockSpec((1, f_out_p), lambda i: (0, 0)),
                pl.BlockSpec(memory_space=pltpu.MemorySpace.SMEM),
            ],
            out_specs=pl.BlockSpec((tile_rows, f_out_p), lambda i: (i, 0)),
        ),
        compiler_params=pltpu.CompilerParams(
            dimension_semantics=("parallel",),
            vmem_limit_bytes=vmem_limit_bytes),
    )(xp, wt, hbp, y2)

    # ---- Stage B: tiled aggregation + activation ---------------------------
    # Keep x_tangent fully resident in VMEM (DMA'd once) when it fits a small
    # budget (2x for double buffering); otherwise stream it per K tile.
    xt_bytes = 2 * n_pad * f_out_p * jnp.dtype(xt_dtype).itemsize
    xt_resident = xt_bytes <= xt_resident_budget_bytes
    if xt_resident:
        xt_spec = pl.BlockSpec((n_pad, f_out_p), lambda i, k: (0, 0))
    else:
        xt_spec = pl.BlockSpec((tile_k, f_out_p), lambda i, k: (k, 0))

    h = pl.pallas_call(
        functools.partial(agg_act_kernel, c_in=c_in, c_out=c_out,
                          approx=approx_recip, xt_resident=xt_resident,
                          tile_k=tile_k),
        out_shape=jax.ShapeDtypeStruct((n_pad, f_out_p), f32),
        grid_spec=pltpu.PrefetchScalarGridSpec(
            num_scalar_prefetch=0,
            grid=(n_pad // tile_m, n_pad // tile_k),
            in_specs=[
                pl.BlockSpec((tile_m, tile_k), lambda i, k: (i, k)),
                xt_spec,
            ],
            out_specs=pl.BlockSpec((tile_m, f_out_p), lambda i, k: (i, 0)),
        ),
        compiler_params=pltpu.CompilerParams(
            dimension_semantics=("parallel", "arbitrary"),
            vmem_limit_bytes=vmem_limit_bytes),
    )(adjp, xt)

    # module returns (h, adj)
    return h[:n, :f_out], adj


# ----------------------------------------------------------------------------

if __name__ == "__main__":
    # N not a multiple of the tiles (exercises node padding), F_in != F_out,
    # both < 128 (exercises lane padding), and small tiles for the strict check
    # so both aggregation grid axes are > 1 (exercises the accumulator path).
    N, F_IN, F_OUT = 200, 48, 32
    C_IN, C_OUT = 1.0, 1.0

    key = jax.random.PRNGKey(0)
    kx, kadj, kw, kb = jax.random.split(key, 4)

    # Points near the origin of the Poincare ball (projected onto it).
    x = 0.1 * jax.random.normal(kx, (N, F_IN), dtype=jnp.float32)
    x = _proj(x, C_IN)

    # Dense row-normalized adjacency (stand-in for torch.spmm's sparse adj).
    adj_raw = (jax.random.uniform(kadj, (N, N)) < 0.1).astype(jnp.float32)
    adj_raw = adj_raw + jnp.eye(N, dtype=jnp.float32)
    adj = adj_raw / jnp.sum(adj_raw, axis=-1, keepdims=True)

    # HypLinear params: xavier_uniform_(gain=sqrt(2)) weight, small bias.
    gain = math.sqrt(2.0)
    bound = gain * math.sqrt(6.0 / (F_IN + F_OUT))
    weight = jax.random.uniform(kw, (F_OUT, F_IN), minval=-bound, maxval=bound,
                                dtype=jnp.float32)
    bias = 0.02 * jax.random.normal(kb, (F_OUT,), dtype=jnp.float32)

    h_ref = reference_forward(x, adj, weight, bias, C_IN, C_OUT)

    # 1) Strict-numerics config: f32 adjacency, exact reciprocals, small tiles
    #    (multi-step K axis so the in-place accumulation path is exercised).
    h_exact, adj_out = hyperbolic_graph_convolution(
        x, adj, weight, bias, C_IN, C_OUT,
        tile_rows=128, tile_m=128, tile_k=128,
        adj_dtype=jnp.float32, approx_recip=False)
    h_exact = jax.block_until_ready(h_exact)
    assert h_exact.shape == (N, F_OUT)
    assert adj_out.shape == (N, N)
    err = float(jnp.max(jnp.abs(h_exact - h_ref)))
    assert jnp.allclose(h_exact, h_ref, rtol=1e-4, atol=1e-4), err

    # 2) Default performance config: bf16 adjacency + bf16 x_tangent into the
    #    MXU, EUP approximate reciprocals, large tiles, resident x_tangent
    #    (looser tolerance vs. the f32 reference).
    h_fast, _ = hyperbolic_graph_convolution(x, adj, weight, bias, C_IN, C_OUT)
    h_fast = jax.block_until_ready(h_fast)
    err_fast = float(jnp.max(jnp.abs(h_fast - h_ref)))
    assert jnp.allclose(h_fast, h_ref, rtol=3e-2, atol=3e-2), err_fast

    print("KERNEL_OK")
</pallas_src>

<mosaic_0001>
module attributes {stable_mosaic.version = 11 : i64} {
  func.func @hyplinear_logmap_kernel(%arg0: i32, %arg1: memref<128x128xf32, #tpu.memory_space<vmem>>, %arg2: memref<128x128xf32, #tpu.memory_space<vmem>>, %arg3: memref<1x128xf32, #tpu.memory_space<vmem>>, %arg4: memref<1x1xf32, #tpu.memory_space<smem>>, %arg5: memref<128x128xf32, #tpu.memory_space<vmem>>) attributes {dimension_semantics = [#tpu.dimension_semantics<parallel>], iteration_bounds = array<i64: 2>, scalar_prefetch = 0 : i64, scratch_operands = 0 : i64, tpu.core_type = #tpu.core_type<tc>, window_params = [{transform_indices = @transform_0, window_bounds = array<i64: 128, 128>}, {pipeline_mode = #tpu.pipeline_mode<synchronous>, transform_indices = @transform_1, window_bounds = array<i64: 128, 128>}, {pipeline_mode = #tpu.pipeline_mode<synchronous>, transform_indices = @transform_2, window_bounds = array<i64: 1, 128>}, {transform_indices = @transform_3, window_bounds = array<i64: 1, 1>}, {transform_indices = @transform_4, window_bounds = array<i64: 128, 128>}]} {
    %c0 = arith.constant 0 : index
    %c0_0 = arith.constant 0 : index
    %0 = vector.load %arg1[%c0, %c0_0] : memref<128x128xf32, #tpu.memory_space<vmem>>, vector<128x128xf32>
    %c0_1 = arith.constant 0 : index
    %c0_2 = arith.constant 0 : index
    %1 = vector.load %arg2[%c0_1, %c0_2] : memref<128x128xf32, #tpu.memory_space<vmem>>, vector<128x128xf32>
    %c0_3 = arith.constant 0 : index
    %c0_4 = arith.constant 0 : index
    %2 = vector.load %arg3[%c0_3, %c0_4] : memref<1x128xf32, #tpu.memory_space<vmem>>, vector<1x128xf32>
    %c0_5 = arith.constant 0 : index
    %c0_6 = arith.constant 0 : index
    %3 = memref.load %arg4[%c0_5, %c0_6] : memref<1x1xf32, #tpu.memory_space<smem>>
    %4 = arith.mulf %0, %0 : vector<128x128xf32>
    %cst = arith.constant dense<0.000000e+00> : vector<128xf32>
    %5 = vector.multi_reduction <add>, %4, %cst [1] : vector<128x128xf32> to vector<128xf32>
    %6 = vector.shape_cast %5 : vector<128xf32> to vector<128x1xf32>
    %7 = math.sqrt %6 : vector<128x1xf32>
    %cst_7 = arith.constant 1.000000e-15 : f32
    %8 = vector.broadcast %cst_7 : f32 to vector<128x1xf32>
    %9 = arith.maximumf %7, %8 : vector<128x1xf32>
    %cst_8 = arith.constant dense<0.000000e+00> : vector<128x128xf32>
    %10 = tpu.matmul %0, %1, %cst_8 {dimension_numbers = #tpu.dot_dimension_numbers<[1], [0], [0], [1], [0, 0, 1, 1], [], []>} : vector<128x128xf32>, vector<128x128xf32>, vector<128x128xf32> -> vector<128x128xf32>
    %11 = arith.mulf %10, %10 : vector<128x128xf32>
    %cst_9 = arith.constant dense<0.000000e+00> : vector<128xf32>
    %12 = vector.multi_reduction <add>, %11, %cst_9 [1] : vector<128x128xf32> to vector<128xf32>
    %13 = vector.shape_cast %12 : vector<128xf32> to vector<128x1xf32>
    %14 = math.sqrt %13 : vector<128x1xf32>
    %cst_10 = arith.constant 1.000000e-15 : f32
    %15 = vector.broadcast %cst_10 : f32 to vector<128x1xf32>
    %16 = arith.maximumf %14, %15 : vector<128x1xf32>
    %17 = tpu.reciprocal %9 : vector<128x1xf32> -> vector<128x1xf32>
    %18 = arith.mulf %16, %17 : vector<128x1xf32>
    %cst_11 = arith.constant 1.000000e+00 : f32
    %19 = vector.broadcast %cst_11 : f32 to vector<128x1xf32>
    %20 = arith.mulf %19, %9 : vector<128x1xf32>
    %cst_12 = arith.constant -1.000000e+00 : f32
    %cst_13 = arith.constant 1.000000e+00 : f32
    %21 = vector.broadcast %cst_12 : f32 to vector<128x1xf32>
    %22 = arith.maximumf %21, %20 : vector<128x1xf32>
    %23 = vector.broadcast %cst_13 : f32 to vector<128x1xf32>
    %24 = arith.minimumf %23, %22 : vector<128x1xf32>
    %25 = math.log1p %24 : vector<128x1xf32>
    %cst_14 = arith.constant 0.000000e+00 : f32
    %26 = vector.broadcast %cst_14 : f32 to vector<128x1xf32>
    %27 = arith.subf %26, %24 : vector<128x1xf32>
    %28 = math.log1p %27 : vector<128x1xf32>
    %29 = arith.subf %25, %28 : vector<128x1xf32>
    %cst_15 = arith.constant 5.000000e-01 : f32
    %30 = vector.broadcast %cst_15 : f32 to vector<128x1xf32>
    %31 = arith.mulf %30, %29 : vector<128x1xf32>
    %32 = arith.mulf %18, %31 : vector<128x1xf32>
    %33 = math.tanh %32 : vector<128x1xf32>
    %cst_16 = arith.constant 1.000000e+00 : f32
    %34 = vector.broadcast %cst_16 : f32 to vector<128x1xf32>
    %35 = arith.mulf %16, %34 : vector<128x1xf32>
    %36 = tpu.reciprocal %35 : vector<128x1xf32> -> vector<128x1xf32>
    %37 = arith.mulf %33, %36 : vector<128x1xf32>
    %38 = vector.broadcast %37 : vector<128x1xf32> to vector<128x128xf32>
    %39 = arith.mulf %38, %10 : vector<128x128xf32>
    %cst_17 = arith.constant 0.000000e+00 : f32
    %40 = vector.broadcast %cst_17 : f32 to vector<128x1xf32>
    %41 = arith.cmpf oeq, %13, %40 : vector<128x1xf32>
    %cst_18 = arith.constant 0.000000e+00 : f32
    %42 = vector.broadcast %cst_18 : f32 to vector<128x128xf32>
    %43 = vector.shape_cast %41 : vector<128x1xi1> to vector<128x1xi1>
    %44 = vector.broadcast %43 : vector<128x1xi1> to vector<128x128xi1>
    %45 = arith.select %44, %42, %39 : vector<128x128xi1>, vector<128x128xf32>
    %cst_19 = arith.constant 1.000000e+00 : f32
    %46 = vector.broadcast %cst_19 : f32 to vector<128x1xf32>
    %47 = arith.mulf %33, %46 : vector<128x1xf32>
    %cst_20 = arith.constant 1.000000e-15 : f32
    %48 = vector.broadcast %cst_20 : f32 to vector<128x1xf32>
    %49 = arith.maximumf %47, %48 : vector<128x1xf32>
    %cst_21 = arith.constant 1.000000e-15 : f32
    %50 = vector.broadcast %cst_21 : f32 to vector<128x1xf32>
    %51 = arith.select %41, %50, %49 : vector<128x1xi1>, vector<128x1xf32>
    %cst_22 = arith.constant 0.995999991 : f32
    %52 = vector.broadcast %cst_22 : f32 to vector<128x1xf32>
    %53 = arith.cmpf ogt, %51, %52 : vector<128x1xf32>
    %54 = tpu.reciprocal %51 : vector<128x1xf32> -> vector<128x1xf32>
    %cst_23 = arith.constant 0.995999991 : f32
    %55 = vector.broadcast %cst_23 : f32 to vector<128x1xf32>
    %56 = arith.mulf %55, %54 : vector<128x1xf32>
    %cst_24 = arith.constant 1.000000e+00 : f32
    %57 = vector.broadcast %cst_24 : f32 to vector<128x1xf32>
    %58 = arith.select %53, %56, %57 : vector<128x1xi1>, vector<128x1xf32>
    %59 = vector.broadcast %58 : vector<128x1xf32> to vector<128x128xf32>
    %60 = arith.mulf %45, %59 : vector<128x128xf32>
    %61 = arith.mulf %60, %60 : vector<128x128xf32>
    %cst_25 = arith.constant dense<0.000000e+00> : vector<128xf32>
    %62 = vector.multi_reduction <add>, %61, %cst_25 [1] : vector<128x128xf32> to vector<128xf32>
    %63 = vector.shape_cast %62 : vector<128xf32> to vector<128x1xf32>
    %64 = vector.broadcast %2 : vector<1x128xf32> to vector<128x128xf32>
    %65 = arith.mulf %60, %64 : vector<128x128xf32>
    %cst_26 = arith.constant dense<0.000000e+00> : vector<128xf32>
    %66 = vector.multi_reduction <add>, %65, %cst_26 [1] : vector<128x128xf32> to vector<128xf32>
    %67 = vector.shape_cast %66 : vector<128xf32> to vector<128x1xf32>
    %cst_27 = arith.constant 2.000000e+00 : f32
    %68 = vector.broadcast %cst_27 : f32 to vector<128x1xf32>
    %69 = arith.mulf %68, %67 : vector<128x1xf32>
    %cst_28 = arith.constant 1.000000e+00 : f32
    %70 = vector.broadcast %cst_28 : f32 to vector<128x1xf32>
    %71 = arith.addf %70, %69 : vector<128x1xf32>
    %cst_29 = arith.constant 1.000000e+00 : f32
    %72 = arith.mulf %cst_29, %3 : f32
    %73 = vector.broadcast %72 : f32 to vector<128x1xf32>
    %74 = arith.addf %71, %73 : vector<128x1xf32>
    %75 = vector.broadcast %74 : vector<128x1xf32> to vector<128x128xf32>
    %76 = arith.mulf %75, %60 : vector<128x128xf32>
    %cst_30 = arith.constant 1.000000e+00 : f32
    %77 = vector.broadcast %cst_30 : f32 to vector<128x1xf32>
    %78 = arith.mulf %77, %63 : vector<128x1xf32>
    %cst_31 = arith.constant 1.000000e+00 : f32
    %79 = vector.broadcast %cst_31 : f32 to vector<128x1xf32>
    %80 = arith.subf %79, %78 : vector<128x1xf32>
    %81 = vector.broadcast %80 : vector<128x1xf32> to vector<128x128xf32>
    %82 = vector.broadcast %2 : vector<1x128xf32> to vector<128x128xf32>
    %83 = arith.mulf %81, %82 : vector<128x128xf32>
    %84 = arith.addf %76, %83 : vector<128x128xf32>
    %cst_32 = arith.constant 2.000000e+00 : f32
    %85 = vector.broadcast %cst_32 : f32 to vector<128x1xf32>
    %86 = arith.mulf %85, %67 : vector<128x1xf32>
    %cst_33 = arith.constant 1.000000e+00 : f32
    %87 = vector.broadcast %cst_33 : f32 to vector<128x1xf32>
    %88 = arith.addf %87, %86 : vector<128x1xf32>
    %cst_34 = arith.constant 1.000000e+00 : f32
    %89 = vector.broadcast %cst_34 : f32 to vector<128x1xf32>
    %90 = arith.mulf %89, %63 : vector<128x1xf32>
    %91 = vector.broadcast %3 : f32 to vector<128x1xf32>
    %92 = arith.mulf %90, %91 : vector<128x1xf32>
    %93 = arith.addf %88, %92 : vector<128x1xf32>
    %cst_35 = arith.constant 1.000000e-15 : f32
    %94 = vector.broadcast %cst_35 : f32 to vector<128x1xf32>
    %95 = arith.maximumf %93, %94 : vector<128x1xf32>
    %96 = tpu.reciprocal %95 : vector<128x1xf32> -> vector<128x1xf32>
    %97 = vector.broadcast %96 : vector<128x1xf32> to vector<128x128xf32>
    %98 = arith.mulf %84, %97 : vector<128x128xf32>
    %99 = arith.mulf %98, %98 : vector<128x128xf32>
    %cst_36 = arith.constant dense<0.000000e+00> : vector<128xf32>
    %100 = vector.multi_reduction <add>, %99, %cst_36 [1] : vector<128x128xf32> to vector<128xf32>
    %101 = vector.shape_cast %100 : vector<128xf32> to vector<128x1xf32>
    %102 = math.sqrt %101 : vector<128x1xf32>
    %cst_37 = arith.constant 1.000000e-15 : f32
    %103 = vector.broadcast %cst_37 : f32 to vector<128x1xf32>
    %104 = arith.maximumf %102, %103 : vector<128x1xf32>
    %cst_38 = arith.constant 0.995999991 : f32
    %105 = vector.broadcast %cst_38 : f32 to vector<128x1xf32>
    %106 = arith.cmpf ogt, %104, %105 : vector<128x1xf32>
    %107 = tpu.reciprocal %104 : vector<128x1xf32> -> vector<128x1xf32>
    %cst_39 = arith.constant 0.995999991 : f32
    %108 = vector.broadcast %cst_39 : f32 to vector<128x1xf32>
    %109 = arith.mulf %108, %107 : vector<128x1xf32>
    %cst_40 = arith.constant 1.000000e+00 : f32
    %110 = vector.broadcast %cst_40 : f32 to vector<128x1xf32>
    %111 = arith.select %106, %109, %110 : vector<128x1xi1>, vector<128x1xf32>
    %112 = vector.broadcast %111 : vector<128x1xf32> to vector<128x128xf32>
    %113 = arith.mulf %98, %112 : vector<128x128xf32>
    %cst_41 = arith.constant 0.995999991 : f32
    %114 = vector.broadcast %cst_41 : f32 to vector<128x1xf32>
    %115 = arith.select %106, %114, %104 : vector<128x1xi1>, vector<128x1xf32>
    %cst_42 = arith.constant 1.000000e+00 : f32
    %116 = vector.broadcast %cst_42 : f32 to vector<128x1xf32>
    %117 = arith.mulf %116, %115 : vector<128x1xf32>
    %cst_43 = arith.constant -1.000000e+00 : f32
    %cst_44 = arith.constant 1.000000e+00 : f32
    %118 = vector.broadcast %cst_43 : f32 to vector<128x1xf32>
    %119 = arith.maximumf %118, %117 : vector<128x1xf32>
    %120 = vector.broadcast %cst_44 : f32 to vector<128x1xf32>
    %121 = arith.minimumf %120, %119 : vector<128x1xf32>
    %122 = math.log1p %121 : vector<128x1xf32>
    %cst_45 = arith.constant 0.000000e+00 : f32
    %123 = vector.broadcast %cst_45 : f32 to vector<128x1xf32>
    %124 = arith.subf %123, %121 : vector<128x1xf32>
    %125 = math.log1p %124 : vector<128x1xf32>
    %126 = arith.subf %122, %125 : vector<128x1xf32>
    %cst_46 = arith.constant 5.000000e-01 : f32
    %127 = vector.broadcast %cst_46 : f32 to vector<128x1xf32>
    %128 = arith.mulf %127, %126 : vector<128x1xf32>
    %cst_47 = arith.constant 1.000000e+00 : f32
    %129 = vector.broadcast %cst_47 : f32 to vector<128x1xf32>
    %130 = arith.mulf %129, %115 : vector<128x1xf32>
    %131 = tpu.reciprocal %130 : vector<128x1xf32> -> vector<128x1xf32>
    %132 = arith.mulf %128, %131 : vector<128x1xf32>
    %133 = vector.broadcast %132 : vector<128x1xf32> to vector<128x128xf32>
    %134 = arith.mulf %133, %113 : vector<128x128xf32>
    %c0_48 = arith.constant 0 : index
    %c0_49 = arith.constant 0 : index
    %135 = vector.load %arg5[%c0_48, %c0_49] : memref<128x128xf32, #tpu.memory_space<vmem>>, vector<128x128xf32>
    tpu.vector_store %arg5[%c0_48, %c0_49], %134 {strides = array<i32>} : memref<128x128xf32, #tpu.memory_space<vmem>>, vector<128x128xf32>,
    return
  }
  func.func @transform_0(%arg0: i32) -> (i32, i32) {
    %c0_i32 = arith.constant 0 : i32
    %c0_i32_0 = arith.constant 0 : i32
    return %arg0, %c0_i32 : i32, i32
  }
  func.func @transform_1(%arg0: i32) -> (i32, i32) {
    %c0_i32 = arith.constant 0 : i32
    %c0_i32_0 = arith.constant 0 : i32
    %c0_i32_1 = arith.constant 0 : i32
    return %c0_i32, %c0_i32_0 : i32, i32
  }
  func.func @transform_2(%arg0: i32) -> (i32, i32) {
    %c0_i32 = arith.constant 0 : i32
    %c0_i32_0 = arith.constant 0 : i32
    %c0_i32_1 = arith.constant 0 : i32
    return %c0_i32, %c0_i32_0 : i32, i32
  }
  func.func @transform_3(%arg0: i32) -> (i32, i32) {
    %c0_i32 = arith.constant 0 : i32
    %c0_i32_0 = arith.constant 0 : i32
    %c0_i32_1 = arith.constant 0 : i32
    return %c0_i32, %c0_i32_0 : i32, i32
  }
  func.func @transform_4(%arg0: i32) -> (i32, i32) {
    %c0_i32 = arith.constant 0 : i32
    %c0_i32_0 = arith.constant 0 : i32
    return %arg0, %c0_i32 : i32, i32
  }
}

</mosaic_0001>

<llo_original>
// kernel: tpu_custom_call.1
$region0: #{tpu_custom_call.1}
  #allocation0 [shape = 'u32[]', space=smem, size = 0x4, offset = 0x4, fixed_abs, tag = 'smem constant byte address 0x4 - core index']
  #allocation1 [shape = 'u32[144,128]{1,0:T(1,128)}', space=vmem, size = 0x12000, scoped, tag = 'internal scratch']
  #allocation2 [shape = 'f32[1,1]{1,0:T(1,128)S(6)}', space=smem, size = 0x200, scoped, tag = 'scoped memory for tpu_custom_call.1']
  %s0 = inlined_call_operand.hbm [shape: f32[256,128], index: 0, kind: input, shape index: {}]
  %s1 = inlined_call_operand.hbm [shape: f32[128,128], index: 1, kind: input, shape index: {}]
  %s2 = inlined_call_operand.vmem [shape: f32[1,128], index: 2, kind: input, shape index: {}]
  %s3 = inlined_call_operand.<no memory space> [shape: f32[1,1], index: 3, kind: input, shape index: {}]
  %s4 = inlined_call_operand.hbm [shape: f32[256,128], index: 4, kind: output, shape index: {}]
  %s5 = sld [smem:[#allocation0]]
  $region57: #{tpu_custom_call.1} parent=0
    _
  %s7 = ssub.s32 1, %s5
  %s8 = scalar_select 0, %s7, %s5
  %9 = sst [smem:[#allocation2]] %s3
  $region1: #{tpu_custom_call.1} parent=0
    #allocation3 [shape = 'u8[131072]{0}', space=vmem, size = 0x20000, scoped, tag = 'input window, operand 0']
    #allocation4 [shape = 's32[2]{0}', space=sflag, size = 0x8, scoped, tag = 'scoped memory for tpu_custom_call.1']
    #allocation5 [shape = 's32[2]{0}', space=sflag, size = 0x8, scoped, tag = 'scoped memory for tpu_custom_call.1']
    #allocation6 [shape = 'u8[65536]{0}', space=vmem, size = 0x10000, scoped, tag = 'input window, operand 1, single buffered']
    #allocation7 [shape = 's32[1]{0}', space=sflag, size = 0x4, scoped, tag = 'scoped memory for tpu_custom_call.1']
    #allocation8 [shape = 'u8[131072]{0}', space=vmem, size = 0x20000, scoped, tag = 'output window, operand 0']
    %10 = vsyncpa [#allocation4], 0
    %s11 = scalar_lea.sflag [#allocation4], 1
    %12 = vsyncpa %s11, 0
    %13 = vsyncpa [#allocation7], 0
    %14 = vsyncpa [#allocation5], 0
    %s15 = scalar_lea.sflag [#allocation5], 1
    %16 = vsyncpa %s15, 0
    loop: start=0, step=1, limit=4
    $region2: #{tpu_custom_call.1} parent=1 // loop_pre_header
      _
    $region3: #{tpu_custom_call.1} parent=1 // loop_header
      %s18 = sphi 0, %s22
      %p19 = scmp.ge.s32.totalorder %s18, 4
      %s28 = sphi 0, %s30
      %s31 = sphi 0, %s28
      %s32 = sphi 0, %s31
      %s48 = sphi 0, %s32
      %s52 = sphi 0, %s52
      %s54 = sphi 0, %s52
      %s55 = sphi 0, %s54
      %s69 = sphi 0, %s55
      %s73 = sphi 0, %s73
      %s75 = sphi 0, %s73
      %s76 = sphi 0, %s75
      %s90 = sphi 0, %s76
      %s94 = sphi 0, %s94
      %s96 = sphi 0, %s94
      %s97 = sphi 0, %s96
      %s111 = sphi 0, %s97
      %s117 = sphi 0, %s119
      %s120 = sphi 0, %s117
      %s121 = sphi 0, %s120
      %s137 = sphi 0, %s121
    $region4: #{tpu_custom_call.1} parent=1 // loop_header_branch
      %21 = sbr.rel (%p19) target = $region8
    $region5: #{tpu_custom_call.1} parent=1 // loop_body
      %s23 = ssub.s32 %s18, 1
      %s24 = ssub.s32 %s18, 2
      %s25 = sadd.s32 %s18, 1
      %s26 = ssub.s32 %s18, %s25
      %p27 = scmp.eq.s32.totalorder %s26, 0
      %s29 = sadd.s32 %s28, 1
      %s30 = scalar_select %p27, %s28, %s29
      %p33 = pneg %p27
      %p34 = scmp.eq.s32.totalorder %s18, 1
      %p35 = por %p33, %p34
      %p36 = scmp.ne.s32.totalorder %s28, %s31
      %p37 = scmp.eq.s32.totalorder %s18, 0
      %p38 = por %p36, %p37
      %p39 = scmp.ne.s32.totalorder %s28, %s31
      %p40 = scmp.eq.s32.totalorder %s23, 1
      %p41 = por %p39, %p40
      %p42 = scmp.ne.s32.totalorder %s31, %s32
      %p43 = scmp.eq.s32.totalorder %s23, 0
      %p44 = por %p42, %p43
      %p45 = scmp.ne.s32.totalorder %s31, %s32
      %p46 = scmp.eq.s32.totalorder %s24, 1
      %p47 = por %p45, %p46
      %p49 = scmp.ne.s32.totalorder %s32, %s48
      %p50 = scmp.eq.s32.totalorder %s24, 0
      %p51 = por %p49, %p50
      %s53 = sadd.s32 %s52, 1
      %p56 = scmp.eq.s32.totalorder %s18, 1
      %p57 = scmp.ne.s32.totalorder %s52, %s54
      %p58 = scmp.eq.s32.totalorder %s18, 0
      %p59 = por %p57, %p58
      %p60 = scmp.ne.s32.totalorder %s52, %s54
      %p61 = scmp.eq.s32.totalorder %s23, 1
      %p62 = por %p60, %p61
      %p63 = scmp.ne.s32.totalorder %s54, %s55
      %p64 = scmp.eq.s32.totalorder %s23, 0
      %p65 = por %p63, %p64
      %p66 = scmp.ne.s32.totalorder %s54, %s55
      %p67 = scmp.eq.s32.totalorder %s24, 1
      %p68 = por %p66, %p67
      %p70 = scmp.ne.s32.totalorder %s55, %s69
      %p71 = scmp.eq.s32.totalorder %s24, 0
      %p72 = por %p70, %p71
      %s74 = sadd.s32 %s73, 1
      %p77 = scmp.eq.s32.totalorder %s18, 1
      %p78 = scmp.ne.s32.totalorder %s73, %s75
      %p79 = scmp.eq.s32.totalorder %s18, 0
      %p80 = por %p78, %p79
      %p81 = scmp.ne.s32.totalorder %s73, %s75
      %p82 = scmp.eq.s32.totalorder %s23, 1
      %p83 = por %p81, %p82
      %p84 = scmp.ne.s32.totalorder %s75, %s76
      %p85 = scmp.eq.s32.totalorder %s23, 0
      %p86 = por %p84, %p85
      %p87 = scmp.ne.s32.totalorder %s75, %s76
      %p88 = scmp.eq.s32.totalorder %s24, 1
      %p89 = por %p87, %p88
      %p91 = scmp.ne.s32.totalorder %s76, %s90
      %p92 = scmp.eq.s32.totalorder %s24, 0
      %p93 = por %p91, %p92
      %s95 = sadd.s32 %s94, 1
      %p98 = scmp.eq.s32.totalorder %s18, 1
      %p99 = scmp.ne.s32.totalorder %s94, %s96
      %p100 = scmp.eq.s32.totalorder %s18, 0
      %p101 = por %p99, %p100
      %p102 = scmp.ne.s32.totalorder %s94, %s96
      %p103 = scmp.eq.s32.totalorder %s23, 1
      %p104 = por %p102, %p103
      %p105 = scmp.ne.s32.totalorder %s96, %s97
      %p106 = scmp.eq.s32.totalorder %s23, 0
      %p107 = por %p105, %p106
      %p108 = scmp.ne.s32.totalorder %s96, %s97
      %p109 = scmp.eq.s32.totalorder %s24, 1
      %p110 = por %p108, %p109
      %p112 = scmp.ne.s32.totalorder %s97, %s111
      %p113 = scmp.eq.s32.totalorder %s24, 0
      %p114 = por %p112, %p113
      %s115 = ssub.s32 %s18, %s25
      %p116 = scmp.eq.s32.totalorder %s115, 0
      %s118 = sadd.s32 %s117, 1
      %s119 = scalar_select %p116, %s117, %s118
      %p122 = pneg %p116
      %p123 = scmp.eq.s32.totalorder %s18, 1
      %p124 = por %p122, %p123
      %p125 = scmp.ne.s32.totalorder %s117, %s120
      %p126 = scmp.eq.s32.totalorder %s18, 0
      %p127 = por %p125, %p126
      %p128 = scmp.ne.s32.totalorder %s117, %s120
      %p129 = scmp.eq.s32.totalorder %s23, 1
      %p130 = por %p128, %p129
      %p131 = scmp.ne.s32.totalorder %s120, %s121
      %p132 = scmp.eq.s32.totalorder %s23, 0
      %p133 = por %p131, %p132
      %p134 = scmp.ne.s32.totalorder %s120, %s121
      %p135 = scmp.eq.s32.totalorder %s24, 1
      %p136 = por %p134, %p135
      %p138 = scmp.ne.s32.totalorder %s121, %s137
      %p139 = scmp.eq.s32.totalorder %s24, 0
      %p140 = por %p138, %p139
      %p141 = scmp.le.s32.totalorder 1, %s18
      %p142 = scmp.lt.s32.totalorder %s18, 3
      %p143 = pnand %p141, %p142
      %p144 = pneg %p143
      // Predicated region
      $region9: #{tpu_custom_call.1} parent=5 // pred_check
        _
      $region10: #{tpu_custom_call.1} parent=5 // pred_check_branch
        %146 = sbr.rel (%p143) target = $region12
      $region11: #{tpu_custom_call.1} parent=5 // pred_region
        %s147 = ssub.s32 %s18, 1
        // Predicated region
        $region13: #{tpu_custom_call.1} parent=11 // pred_check
          %p148 = pneg %p65
        $region14: #{tpu_custom_call.1} parent=11 // pred_check_branch
          %150 = sbr.rel (%p148) target = $region16
        $region15: #{tpu_custom_call.1} parent=11 // pred_region
          %s152 = ssub.s32 2048, 2048
          %153 = vsyncadd [#allocation7], %s152
          %s154 = sshll.u32 [#allocation6], 4
          %s155 = int_to_ptr.vmem [resolvable:$true] %s154
          %160 = dma.hbm_to_vmem [thread:$0]  %s1, 2048, %s155, [#allocation7], 128, 128, 8
        $region16: #{tpu_custom_call.1} parent=11 // pred_fallthru
          _
        // Predicated region
        $region17: #{tpu_custom_call.1} parent=11 // pred_check
          %p161 = pneg %p86
        $region18: #{tpu_custom_call.1} parent=11 // pred_check_branch
          %163 = sbr.rel (%p161) target = $region20
        $region19: #{tpu_custom_call.1} parent=11 // pred_region
          _
        $region20: #{tpu_custom_call.1} parent=11 // pred_fallthru
          _
        // Predicated region
        $region21: #{tpu_custom_call.1} parent=11 // pred_check
          %p164 = pneg %p107
        $region22: #{tpu_custom_call.1} parent=11 // pred_check_branch
          %166 = sbr.rel (%p164) target = $region24
        $region23: #{tpu_custom_call.1} parent=11 // pred_region
          _
        $region24: #{tpu_custom_call.1} parent=11 // pred_fallthru
          _
      $region12: #{tpu_custom_call.1} parent=5 // pred_fallthru
        _
      %p167 = scmp.lt.s32.totalorder %s18, 2
      // Predicated region
      $region25: #{tpu_custom_call.1} parent=5 // pred_check
        %p168 = pneg %p167
      $region26: #{tpu_custom_call.1} parent=5 // pred_check_branch
        %170 = sbr.rel (%p168) target = $region28
      $region27: #{tpu_custom_call.1} parent=5 // pred_region
        // Predicated region
        $region29: #{tpu_custom_call.1} parent=27 // pred_check
          %p171 = pneg %p38
        $region30: #{tpu_custom_call.1} parent=27 // pred_check_branch
          %173 = sbr.rel (%p171) target = $region32
        $region31: #{tpu_custom_call.1} parent=27 // pred_region
          %s174 = sand.u32 %s28, 1
          %s175 = scalar_lea.sflag [#allocation4], %s174
          %s176 = sand.u32 %s28, 1
          %s177 = smul.addr %s176, 128
          %s178 = scalar_lea.vmem [#allocation3], %s177
          %s179 = smul.u32 16, %s18
          %s181 = ssub.s32 2048, 2048
          %182 = vsyncadd %s175, %s181
          %s183 = smul.addr %s179, 128
          %s184 = scalar_lea.hbm %s0, %s183
          %s185 = sshll.u32 %s178, 4
          %s186 = int_to_ptr.vmem [resolvable:$true] %s185
          %191 = dma.hbm_to_vmem [thread:$0]  %s184, 2048, %s186, %s175, 128, 128, 8
        $region32: #{tpu_custom_call.1} parent=27 // pred_fallthru
          _
      $region28: #{tpu_custom_call.1} parent=5 // pred_fallthru
        _
      %p192 = scmp.le.s32.totalorder 1, %s18
      %p193 = scmp.lt.s32.totalorder %s18, 3
      %p194 = pnand %p192, %p193
      %p195 = pneg %p194
      // Predicated region
      $region33: #{tpu_custom_call.1} parent=5 // pred_check
        _
      $region34: #{tpu_custom_call.1} parent=5 // pred_check_branch
        %197 = sbr.rel (%p194) target = $region36
      $region35: #{tpu_custom_call.1} parent=5 // pred_region
        %s198 = ssub.s32 %s18, 1
        %s199 = sand.u32 %s31, 1
        %s200 = scalar_lea.sflag [#allocation4], %s199
        %s201 = sand.u32 %s31, 1
        %s202 = smul.addr %s201, 128
        %s203 = scalar_lea.vmem [#allocation3], %s202
        // Predicated region
        $region37: #{tpu_custom_call.1} parent=35 // pred_check
          %p204 = pneg %p44
        $region38: #{tpu_custom_call.1} parent=35 // pred_check_branch
          %206 = sbr.rel (%p204) target = $region40
        $region39: #{tpu_custom_call.1} parent=35 // pred_region
          %207 = dma.done %s200, 2048
        $region40: #{tpu_custom_call.1} parent=35 // pred_fallthru
          _
        // Predicated region
        $region41: #{tpu_custom_call.1} parent=35 // pred_check
          %p208 = pneg %p65
        $region42: #{tpu_custom_call.1} parent=35 // pred_check_branch
          %210 = sbr.rel (%p208) target = $region44
        $region43: #{tpu_custom_call.1} parent=35 // pred_region
          %211 = dma.done [#allocation7], 2048
        $region44: #{tpu_custom_call.1} parent=35 // pred_fallthru
          _
        %s212 = sand.u32 %s31, 1
        %s213 = scalar_lea.sflag [#allocation4], %s212
        %s214 = sand.u32 %s31, 1
        %s215 = smul.addr %s214, 128
        %s216 = scalar_lea.vmem [#allocation3], %s215
        %p217 = pneg %p44
        %p218 = pneg %p41
        %p219 = pneg %p65
        %p220 = pneg %p62
        %p221 = pneg %p86
        %p222 = pneg %p83
        %p223 = pneg %p107
        %p224 = pneg %p104
        %p225 = pneg %p133
        %p226 = pneg %p130
        %s227 = sand.u32 %s120, 1
        %s228 = scalar_lea.sflag [#allocation5], %s227
        %s229 = sand.u32 %s120, 1
        %s230 = smul.addr %s229, 128
        %s231 = scalar_lea.vmem [#allocation8], %s230
        %s232 = smul.u32 16, %s23
        %s233 = smul.u32 16, %s23
        %v234 = vld [vmem:[%s203] sm:$0xff]
        %v235 = vld [vmem:[%s203 + $0x8] sm:$0xff]
        %v236 = vld [vmem:[%s203 + $0x10] sm:$0xff]
        %v237 = vld [vmem:[%s203 + $0x18] sm:$0xff]
        %v238 = vld [vmem:[%s203 + $0x20] sm:$0xff]
        %v239 = vld [vmem:[%s203 + $0x28] sm:$0xff]
        %v240 = vld [vmem:[%s203 + $0x30] sm:$0xff]
        %v241 = vld [vmem:[%s203 + $0x38] sm:$0xff]
        %v242 = vld [vmem:[%s203 + $0x40] sm:$0xff]
        %v243 = vld [vmem:[%s203 + $0x48] sm:$0xff]
        %v244 = vld [vmem:[%s203 + $0x50] sm:$0xff]
        %v245 = vld [vmem:[%s203 + $0x58] sm:$0xff]
        %v246 = vld [vmem:[%s203 + $0x60] sm:$0xff]
        %v247 = vld [vmem:[%s203 + $0x68] sm:$0xff]
        %v248 = vld [vmem:[%s203 + $0x70] sm:$0xff]
        %v249 = vld [vmem:[%s203 + $0x78] sm:$0xff]
        %v250 = vld [vmem:[#allocation6] sm:$0xff]
        %v251 = vld [vmem:[#allocation6 + $0x8] sm:$0xff]
        %v252 = vld [vmem:[#allocation6 + $0x10] sm:$0xff]
        %v253 = vld [vmem:[#allocation6 + $0x18] sm:$0xff]
        %v254 = vld [vmem:[#allocation6 + $0x20] sm:$0xff]
        %v255 = vld [vmem:[#allocation6 + $0x28] sm:$0xff]
        %v256 = vld [vmem:[#allocation6 + $0x30] sm:$0xff]
        %v257 = vld [vmem:[#allocation6 + $0x38] sm:$0xff]
        %v258 = vld [vmem:[#allocation6 + $0x40] sm:$0xff]
        %v259 = vld [vmem:[#allocation6 + $0x48] sm:$0xff]
        %v260 = vld [vmem:[#allocation6 + $0x50] sm:$0xff]
        %v261 = vld [vmem:[#allocation6 + $0x58] sm:$0xff]
        %v262 = vld [vmem:[#allocation6 + $0x60] sm:$0xff]
        %v263 = vld [vmem:[#allocation6 + $0x68] sm:$0xff]
        %v264 = vld [vmem:[#allocation6 + $0x70] sm:$0xff]
        %v265 = vld [vmem:[#allocation6 + $0x78] sm:$0xff]
        %v266 = vld [vmem:[%s2] sm:$0x1]
        %s267 = sld [smem:[#allocation2]]
        %v268 = vmul.f32 %v234, %v234
        %v269 = vmul.f32 %v235, %v235
        %v270 = vmul.f32 %v236, %v236
        %v271 = vmul.f32 %v237, %v237
        %v272 = vmul.f32 %v238, %v238
        %v273 = vmul.f32 %v239, %v239
        %v274 = vmul.f32 %v240, %v240
        %v275 = vmul.f32 %v241, %v241
        %v276 = vmul.f32 %v242, %v242
        %v277 = vmul.f32 %v243, %v243
        %v278 = vmul.f32 %v244, %v244
        %v279 = vmul.f32 %v245, %v245
        %v280 = vmul.f32 %v246, %v246
        %v281 = vmul.f32 %v247, %v247
        %v282 = vmul.f32 %v248, %v248
        %v283 = vmul.f32 %v249, %v249
        %284 = vadd.xlane.f32.xlu0 %v268
        %v285 = vpop.xlane.xlu0 %284
        %286 = vadd.xlane.f32.xlu0 %v269
        %v287 = vpop.xlane.xlu0 %286
        %288 = vadd.xlane.f32.xlu0 %v270
        %v289 = vpop.xlane.xlu0 %288
        %290 = vadd.xlane.f32.xlu0 %v271
        %v291 = vpop.xlane.xlu0 %290
        %292 = vadd.xlane.f32.xlu0 %v272
        %v293 = vpop.xlane.xlu0 %292
        %294 = vadd.xlane.f32.xlu0 %v273
        %v295 = vpop.xlane.xlu0 %294
        %296 = vadd.xlane.f32.xlu0 %v274
        %v297 = vpop.xlane.xlu0 %296
        %298 = vadd.xlane.f32.xlu0 %v275
        %v299 = vpop.xlane.xlu0 %298
        %300 = vadd.xlane.f32.xlu0 %v276
        %v301 = vpop.xlane.xlu0 %300
        %302 = vadd.xlane.f32.xlu0 %v277
        %v303 = vpop.xlane.xlu0 %302
        %304 = vadd.xlane.f32.xlu0 %v278
        %v305 = vpop.xlane.xlu0 %304
        %306 = vadd.xlane.f32.xlu0 %v279
        %v307 = vpop.xlane.xlu0 %306
        %308 = vadd.xlane.f32.xlu0 %v280
        %v309 = vpop.xlane.xlu0 %308
        %310 = vadd.xlane.f32.xlu0 %v281
        %v311 = vpop.xlane.xlu0 %310
        %312 = vadd.xlane.f32.xlu0 %v282
        %v313 = vpop.xlane.xlu0 %312
        %314 = vadd.xlane.f32.xlu0 %v283
        %v315 = vpop.xlane.xlu0 %314
        %v316 = vrsqrt.pop %v285
        %v317 = vmul.f32 %v285, %v316
        %vm318 = vcmp.eq.f32.partialorder %v285, inf
        %v319 = vsel %vm318, %v285, %v317
        %vm320 = vcmp.eq.f32.partialorder %v285, 0.0
        %v321 = vand.u32 %v285, 2147483648
        %v322 = vsel %vm320, %v321, %v319
        %v323 = vrsqrt.pop %v287
        %v324 = vmul.f32 %v287, %v323
        %vm325 = vcmp.eq.f32.partialorder %v287, inf
        %v326 = vsel %vm325, %v287, %v324
        %vm327 = vcmp.eq.f32.partialorder %v287, 0.0
        %v328 = vand.u32 %v287, 2147483648
        %v329 = vsel %vm327, %v328, %v326
        %v330 = vrsqrt.pop %v289
        %v331 = vmul.f32 %v289, %v330
        %vm332 = vcmp.eq.f32.partialorder %v289, inf
        %v333 = vsel %vm332, %v289, %v331
        %vm334 = vcmp.eq.f32.partialorder %v289, 0.0
        %v335 = vand.u32 %v289, 2147483648
        %v336 = vsel %vm334, %v335, %v333
        %v337 = vrsqrt.pop %v291
        %v338 = vmul.f32 %v291, %v337
        %vm339 = vcmp.eq.f32.partialorder %v291, inf
        %v340 = vsel %vm339, %v291, %v338
        %vm341 = vcmp.eq.f32.partialorder %v291, 0.0
        %v342 = vand.u32 %v291, 2147483648
        %v343 = vsel %vm341, %v342, %v340
        %v344 = vrsqrt.pop %v293
        %v345 = vmul.f32 %v293, %v344
        %vm346 = vcmp.eq.f32.partialorder %v293, inf
        %v347 = vsel %vm346, %v293, %v345
        %vm348 = vcmp.eq.f32.partialorder %v293, 0.0
        %v349 = vand.u32 %v293, 2147483648
        %v350 = vsel %vm348, %v349, %v347
        %v351 = vrsqrt.pop %v295
        %v352 = vmul.f32 %v295, %v351
        %vm353 = vcmp.eq.f32.partialorder %v295, inf
        %v354 = vsel %vm353, %v295, %v352
        %vm355 = vcmp.eq.f32.partialorder %v295, 0.0
        %v356 = vand.u32 %v295, 2147483648
        %v357 = vsel %vm355, %v356, %v354
        %v358 = vrsqrt.pop %v297
        %v359 = vmul.f32 %v297, %v358
        %vm360 = vcmp.eq.f32.partialorder %v297, inf
        %v361 = vsel %vm360, %v297, %v359
        %vm362 = vcmp.eq.f32.partialorder %v297, 0.0
        %v363 = vand.u32 %v297, 2147483648
        %v364 = vsel %vm362, %v363, %v361
        %v365 = vrsqrt.pop %v299
        %v366 = vmul.f32 %v299, %v365
        %vm367 = vcmp.eq.f32.partialorder %v299, inf
        %v368 = vsel %vm367, %v299, %v366
        %vm369 = vcmp.eq.f32.partialorder %v299, 0.0
        %v370 = vand.u32 %v299, 2147483648
        %v371 = vsel %vm369, %v370, %v368
        %v372 = vrsqrt.pop %v301
        %v373 = vmul.f32 %v301, %v372
        %vm374 = vcmp.eq.f32.partialorder %v301, inf
        %v375 = vsel %vm374, %v301, %v373
        %vm376 = vcmp.eq.f32.partialorder %v301, 0.0
        %v377 = vand.u32 %v301, 2147483648
        %v378 = vsel %vm376, %v377, %v375
        %v379 = vrsqrt.pop %v303
        %v380 = vmul.f32 %v303, %v379
        %vm381 = vcmp.eq.f32.partialorder %v303, inf
        %v382 = vsel %vm381, %v303, %v380
        %vm383 = vcmp.eq.f32.partialorder %v303, 0.0
        %v384 = vand.u32 %v303, 2147483648
        %v385 = vsel %vm383, %v384, %v382
        %v386 = vrsqrt.pop %v305
        %v387 = vmul.f32 %v305, %v386
        %vm388 = vcmp.eq.f32.partialorder %v305, inf
        %v389 = vsel %vm388, %v305, %v387
        %vm390 = vcmp.eq.f32.partialorder %v305, 0.0
        %v391 = vand.u32 %v305, 2147483648
        %v392 = vsel %vm390, %v391, %v389
        %v393 = vrsqrt.pop %v307
        %v394 = vmul.f32 %v307, %v393
        %vm395 = vcmp.eq.f32.partialorder %v307, inf
        %v396 = vsel %vm395, %v307, %v394
        %vm397 = vcmp.eq.f32.partialorder %v307, 0.0
        %v398 = vand.u32 %v307, 2147483648
        %v399 = vsel %vm397, %v398, %v396
        %v400 = vrsqrt.pop %v309
        %v401 = vmul.f32 %v309, %v400
        %vm402 = vcmp.eq.f32.partialorder %v309, inf
        %v403 = vsel %vm402, %v309, %v401
        %vm404 = vcmp.eq.f32.partialorder %v309, 0.0
        %v405 = vand.u32 %v309, 2147483648
        %v406 = vsel %vm404, %v405, %v403
        %v407 = vrsqrt.pop %v311
        %v408 = vmul.f32 %v311, %v407
        %vm409 = vcmp.eq.f32.partialorder %v311, inf
        %v410 = vsel %vm409, %v311, %v408
        %vm411 = vcmp.eq.f32.partialorder %v311, 0.0
        %v412 = vand.u32 %v311, 2147483648
        %v413 = vsel %vm411, %v412, %v410
        %v414 = vrsqrt.pop %v313
        %v415 = vmul.f32 %v313, %v414
        %vm416 = vcmp.eq.f32.partialorder %v313, inf
        %v417 = vsel %vm416, %v313, %v415
        %vm418 = vcmp.eq.f32.partialorder %v313, 0.0
        %v419 = vand.u32 %v313, 2147483648
        %v420 = vsel %vm418, %v419, %v417
        %v421 = vrsqrt.pop %v315
        %v422 = vmul.f32 %v315, %v421
        %vm423 = vcmp.eq.f32.partialorder %v315, inf
        %v424 = vsel %vm423, %v315, %v422
        %vm425 = vcmp.eq.f32.partialorder %v315, 0.0
        %v426 = vand.u32 %v315, 2147483648
        %v427 = vsel %vm425, %v426, %v424
        %v428 = vmax.f32 %v322, 1e-15
        %v429 = vmax.f32 %v329, 1e-15
        %v430 = vmax.f32 %v336, 1e-15
        %v431 = vmax.f32 %v343, 1e-15
        %v432 = vmax.f32 %v350, 1e-15
        %v433 = vmax.f32 %v357, 1e-15
        %v434 = vmax.f32 %v364, 1e-15
        %v435 = vmax.f32 %v371, 1e-15
        %v436 = vmax.f32 %v378, 1e-15
        %v437 = vmax.f32 %v385, 1e-15
        %v438 = vmax.f32 %v392, 1e-15
        %v439 = vmax.f32 %v399, 1e-15
        %v440 = vmax.f32 %v406, 1e-15
        %v441 = vmax.f32 %v413, 1e-15
        %v442 = vmax.f32 %v420, 1e-15
        %v443 = vmax.f32 %v427, 1e-15
        %444 = vmatprep.subr.mxu0 0.0
        %445 = vmatpush1.msra.mxu0 %v250
        %446 = vmatprep.subr.mxu0 0.0
        %447 = vmatpush1.msra.mxu0 %v251
        %448 = vmatprep.subr.mxu0 0.0
        %449 = vmatpush1.msra.mxu0 %v252
        %450 = vmatprep.subr.mxu0 0.0
        %451 = vmatpush1.msra.mxu0 %v253
        %452 = vmatprep.subr.mxu0 0.0
        %453 = vmatpush1.msra.mxu0 %v254
        %454 = vmatprep.subr.mxu0 0.0
        %455 = vmatpush1.msra.mxu0 %v255
        %456 = vmatprep.subr.mxu0 0.0
        %457 = vmatpush1.msra.mxu0 %v256
        %458 = vmatprep.subr.mxu0 0.0
        %459 = vmatpush1.msra.mxu0 %v257
        %460 = vmatprep.subr.mxu0 0.0
        %461 = vmatpush1.msra.mxu0 %v258
        %462 = vmatprep.subr.mxu0 0.0
        %463 = vmatpush1.msra.mxu0 %v259
        %464 = vmatprep.subr.mxu0 0.0
        %465 = vmatpush1.msra.mxu0 %v260
        %466 = vmatprep.subr.mxu0 0.0
        %467 = vmatpush1.msra.mxu0 %v261
        %468 = vmatprep.subr.mxu0 0.0
        %469 = vmatpush1.msra.mxu0 %v262
        %470 = vmatprep.subr.mxu0 0.0
        %471 = vmatpush1.msra.mxu0 %v263
        %472 = vmatprep.subr.mxu0 0.0
        %473 = vmatpush1.msra.mxu0 %v264
        %474 = vmatprep.subr.mxu0 0.0
        %475 = vmatpush1.msra.mxu0 %v265
        %476 = vmatprep.subr.mxu0 0.0
        %477 = vmatpush1.msra.mxu0 0.0
        %478 = vmatprep.subr.mxu0 0.0
        %479 = vmatpush1.msra.mxu0 0.0
        %480 = vmatprep.subr.mxu0 0.0
        %481 = vmatpush1.msra.mxu0 0.0
        %482 = vmatprep.subr.mxu0 0.0
        %483 = vmatpush1.msra.mxu0 0.0
        %484 = vmatprep.subr.mxu0 0.0
        %485 = vmatpush1.msra.mxu0 0.0
        %486 = vmatprep.subr.mxu0 0.0
        %487 = vmatpush1.msra.mxu0 0.0
        %488 = vmatprep.subr.mxu0 0.0
        %489 = vmatpush1.msra.mxu0 0.0
        %490 = vmatprep.subr.mxu0 0.0
        %491 = vmatpush1.msra.mxu0 0.0
        %492 = vmatprep.subr.mxu0 0.0
        %493 = vmatpush1.msra.mxu0 0.0
        %494 = vmatprep.subr.mxu0 0.0
        %495 = vmatpush1.msra.mxu0 0.0
        %496 = vmatprep.subr.mxu0 0.0
        %497 = vmatpush1.msra.mxu0 0.0
        %498 = vmatprep.subr.mxu0 0.0
        %499 = vmatpush1.msra.mxu0 0.0
        %500 = vmatprep.subr.mxu0 0.0
        %501 = vmatpush1.msra.mxu0 0.0
        %502 = vmatprep.subr.mxu0 0.0
        %503 = vmatpush1.msra.mxu0 0.0
        %504 = vmatprep.subr.mxu0 0.0
        %505 = vmatpush1.msra.mxu0 0.0
        %506 = vmatprep.subr.mxu0 0.0
        %507 = vmatpush1.msra.mxu0 0.0
        %508 = vmatprep.mubr.f32.mxu0 0.0
        %509 = vmatmul.mubr.f32.gmra.mrb[0].mxu0 %v234
        %v510 = vpop.f32.mrb[0].mxu0
        %v511 = vadd.f32 0.0, %v510
        %v512 = vpop.f32.mrb[0].mxu0
        %513 = vmatprep.mubr.f32.mxu0 0.0
        %514 = vmatmul.mubr.f32.gmra.mrb[0].mxu0 %v235
        %v515 = vpop.f32.mrb[0].mxu0
        %v516 = vadd.f32 0.0, %v515
        %v517 = vpop.f32.mrb[0].mxu0
        %518 = vmatprep.mubr.f32.mxu0 0.0
        %519 = vmatmul.mubr.f32.gmra.mrb[0].mxu0 %v236
        %v520 = vpop.f32.mrb[0].mxu0
        %v521 = vadd.f32 0.0, %v520
        %v522 = vpop.f32.mrb[0].mxu0
        %523 = vmatprep.mubr.f32.mxu0 0.0
        %524 = vmatmul.mubr.f32.gmra.mrb[0].mxu0 %v237
        %v525 = vpop.f32.mrb[0].mxu0
        %v526 = vadd.f32 0.0, %v525
        %v527 = vpop.f32.mrb[0].mxu0
        %528 = vmatprep.mubr.f32.mxu0 0.0
        %529 = vmatmul.mubr.f32.gmra.mrb[0].mxu0 %v238
        %v530 = vpop.f32.mrb[0].mxu0
        %v531 = vadd.f32 0.0, %v530
        %v532 = vpop.f32.mrb[0].mxu0
        %533 = vmatprep.mubr.f32.mxu0 0.0
        %534 = vmatmul.mubr.f32.gmra.mrb[0].mxu0 %v239
        %v535 = vpop.f32.mrb[0].mxu0
        %v536 = vadd.f32 0.0, %v535
        %v537 = vpop.f32.mrb[0].mxu0
        %538 = vmatprep.mubr.f32.mxu0 0.0
        %539 = vmatmul.mubr.f32.gmra.mrb[0].mxu0 %v240
        %v540 = vpop.f32.mrb[0].mxu0
        %v541 = vadd.f32 0.0, %v540
        %v542 = vpop.f32.mrb[0].mxu0
        %543 = vmatprep.mubr.f32.mxu0 0.0
        %544 = vmatmul.mubr.f32.gmra.mrb[0].mxu0 %v241
        %v545 = vpop.f32.mrb[0].mxu0
        %v546 = vadd.f32 0.0, %v545
        %v547 = vpop.f32.mrb[0].mxu0
        %548 = vmatprep.mubr.f32.mxu0 0.0
        %549 = vmatmul.mubr.f32.gmra.mrb[0].mxu0 %v242
        %v550 = vpop.f32.mrb[0].mxu0
        %v551 = vadd.f32 0.0, %v550
        %v552 = vpop.f32.mrb[0].mxu0
        %553 = vmatprep.mubr.f32.mxu0 0.0
        %554 = vmatmul.mubr.f32.gmra.mrb[0].mxu0 %v243
        %v555 = vpop.f32.mrb[0].mxu0
        %v556 = vadd.f32 0.0, %v555
        %v557 = vpop.f32.mrb[0].mxu0
        %558 = vmatprep.mubr.f32.mxu0 0.0
        %559 = vmatmul.mubr.f32.gmra.mrb[0].mxu0 %v244
        %v560 = vpop.f32.mrb[0].mxu0
        %v561 = vadd.f32 0.0, %v560
        %v562 = vpop.f32.mrb[0].mxu0
        %563 = vmatprep.mubr.f32.mxu0 0.0
        %564 = vmatmul.mubr.f32.gmra.mrb[0].mxu0 %v245
        %v565 = vpop.f32.mrb[0].mxu0
        %v566 = vadd.f32 0.0, %v565
        %v567 = vpop.f32.mrb[0].mxu0
        %568 = vmatprep.mubr.f32.mxu0 0.0
        %569 = vmatmul.mubr.f32.gmra.mrb[0].mxu0 %v246
        %v570 = vpop.f32.mrb[0].mxu0
        %v571 = vadd.f32 0.0, %v570
        %v572 = vpop.f32.mrb[0].mxu0
        %573 = vmatprep.mubr.f32.mxu0 0.0
        %574 = vmatmul.mubr.f32.gmra.mrb[0].mxu0 %v247
        %v575 = vpop.f32.mrb[0].mxu0
        %v576 = vadd.f32 0.0, %v575
        %v577 = vpop.f32.mrb[0].mxu0
        %578 = vmatprep.mubr.f32.mxu0 0.0
        %579 = vmatmul.mubr.f32.gmra.mrb[0].mxu0 %v248
        %v580 = vpop.f32.mrb[0].mxu0
        %v581 = vadd.f32 0.0, %v580
        %v582 = vpop.f32.mrb[0].mxu0
        %583 = vmatprep.mubr.f32.mxu0 0.0
        %584 = vmatmul.mubr.f32.gmra.mrb[0].mxu0 %v249
        %v585 = vpop.f32.mrb[0].mxu0
        %v586 = vadd.f32 0.0, %v585
        %v587 = vpop.f32.mrb[0].mxu0
        %588 = vdwg.mxu0
        %v589 = vmul.f32 %v511, %v511
        %v590 = vmul.f32 %v516, %v516
        %v591 = vmul.f32 %v521, %v521
        %v592 = vmul.f32 %v526, %v526
        %v593 = vmul.f32 %v531, %v531
        %v594 = vmul.f32 %v536, %v536
        %v595 = vmul.f32 %v541, %v541
        %v596 = vmul.f32 %v546, %v546
        %v597 = vmul.f32 %v551, %v551
        %v598 = vmul.f32 %v556, %v556
        %v599 = vmul.f32 %v561, %v561
        %v600 = vmul.f32 %v566, %v566
        %v601 = vmul.f32 %v571, %v571
        %v602 = vmul.f32 %v576, %v576
        %v603 = vmul.f32 %v581, %v581
        %v604 = vmul.f32 %v586, %v586
        %605 = vadd.xlane.f32.xlu0 %v589
        %v606 = vpop.xlane.xlu0 %605
        %607 = vadd.xlane.f32.xlu0 %v590
        %v608 = vpop.xlane.xlu0 %607
        %609 = vadd.xlane.f32.xlu0 %v591
        %v610 = vpop.xlane.xlu0 %609
        %611 = vadd.xlane.f32.xlu0 %v592
        %v612 = vpop.xlane.xlu0 %611
        %613 = vadd.xlane.f32.xlu0 %v593
        %v614 = vpop.xlane.xlu0 %613
        %615 = vadd.xlane.f32.xlu0 %v594
        %v616 = vpop.xlane.xlu0 %615
        %617 = vadd.xlane.f32.xlu0 %v595
        %v618 = vpop.xlane.xlu0 %617
        %619 = vadd.xlane.f32.xlu0 %v596
        %v620 = vpop.xlane.xlu0 %619
        %621 = vadd.xlane.f32.xlu0 %v597
        %v622 = vpop.xlane.xlu0 %621
        %623 = vadd.xlane.f32.xlu0 %v598
        %v624 = vpop.xlane.xlu0 %623
        %625 = vadd.xlane.f32.xlu0 %v599
        %v626 = vpop.xlane.xlu0 %625
        %627 = vadd.xlane.f32.xlu0 %v600
        %v628 = vpop.xlane.xlu0 %627
        %629 = vadd.xlane.f32.xlu0 %v601
        %v630 = vpop.xlane.xlu0 %629
        %631 = vadd.xlane.f32.xlu0 %v602
        %v632 = vpop.xlane.xlu0 %631
        %633 = vadd.xlane.f32.xlu0 %v603
        %v634 = vpop.xlane.xlu0 %633
        %635 = vadd.xlane.f32.xlu0 %v604
        %v636 = vpop.xlane.xlu0 %635
        %v637 = vrsqrt.pop %v606
        %v638 = vmul.f32 %v606, %v637
        %vm639 = vcmp.eq.f32.partialorder %v606, inf
        %v640 = vsel %vm639, %v606, %v638
        %vm641 = vcmp.eq.f32.partialorder %v606, 0.0
        %v642 = vand.u32 %v606, 2147483648
        %v643 = vsel %vm641, %v642, %v640
        %v644 = vrsqrt.pop %v608
        %v645 = vmul.f32 %v608, %v644
        %vm646 = vcmp.eq.f32.partialorder %v608, inf
        %v647 = vsel %vm646, %v608, %v645
        %vm648 = vcmp.eq.f32.partialorder %v608, 0.0
        %v649 = vand.u32 %v608, 2147483648
        %v650 = vsel %vm648, %v649, %v647
        %v651 = vrsqrt.pop %v610
        %v652 = vmul.f32 %v610, %v651
        %vm653 = vcmp.eq.f32.partialorder %v610, inf
        %v654 = vsel %vm653, %v610, %v652
        %vm655 = vcmp.eq.f32.partialorder %v610, 0.0
        %v656 = vand.u32 %v610, 2147483648
        %v657 = vsel %vm655, %v656, %v654
        %v658 = vrsqrt.pop %v612
        %v659 = vmul.f32 %v612, %v658
        %vm660 = vcmp.eq.f32.partialorder %v612, inf
        %v661 = vsel %vm660, %v612, %v659
        %vm662 = vcmp.eq.f32.partialorder %v612, 0.0
        %v663 = vand.u32 %v612, 2147483648
        %v664 = vsel %vm662, %v663, %v661
        %v665 = vrsqrt.pop %v614
        %v666 = vmul.f32 %v614, %v665
        %vm667 = vcmp.eq.f32.partialorder %v614, inf
        %v668 = vsel %vm667, %v614, %v666
        %vm669 = vcmp.eq.f32.partialorder %v614, 0.0
        %v670 = vand.u32 %v614, 2147483648
        %v671 = vsel %vm669, %v670, %v668
        %v672 = vrsqrt.pop %v616
        %v673 = vmul.f32 %v616, %v672
        %vm674 = vcmp.eq.f32.partialorder %v616, inf
        %v675 = vsel %vm674, %v616, %v673
        %vm676 = vcmp.eq.f32.partialorder %v616, 0.0
        %v677 = vand.u32 %v616, 2147483648
        %v678 = vsel %vm676, %v677, %v675
        %v679 = vrsqrt.pop %v618
        %v680 = vmul.f32 %v618, %v679
        %vm681 = vcmp.eq.f32.partialorder %v618, inf
        %v682 = vsel %vm681, %v618, %v680
        %vm683 = vcmp.eq.f32.partialorder %v618, 0.0
        %v684 = vand.u32 %v618, 2147483648
        %v685 = vsel %vm683, %v684, %v682
        %v686 = vrsqrt.pop %v620
        %v687 = vmul.f32 %v620, %v686
        %vm688 = vcmp.eq.f32.partialorder %v620, inf
        %v689 = vsel %vm688, %v620, %v687
        %vm690 = vcmp.eq.f32.partialorder %v620, 0.0
        %v691 = vand.u32 %v620, 2147483648
        %v692 = vsel %vm690, %v691, %v689
        %v693 = vrsqrt.pop %v622
        %v694 = vmul.f32 %v622, %v693
        %vm695 = vcmp.eq.f32.partialorder %v622, inf
        %v696 = vsel %vm695, %v622, %v694
        %vm697 = vcmp.eq.f32.partialorder %v622, 0.0
        %v698 = vand.u32 %v622, 2147483648
        %v699 = vsel %vm697, %v698, %v696
        %v700 = vrsqrt.pop %v624
        %v701 = vmul.f32 %v624, %v700
        %vm702 = vcmp.eq.f32.partialorder %v624, inf
        %v703 = vsel %vm702, %v624, %v701
        %vm704 = vcmp.eq.f32.partialorder %v624, 0.0
        %v705 = vand.u32 %v624, 2147483648
        %v706 = vsel %vm704, %v705, %v703
        %v707 = vrsqrt.pop %v626
        %v708 = vmul.f32 %v626, %v707
        %vm709 = vcmp.eq.f32.partialorder %v626, inf
        %v710 = vsel %vm709, %v626, %v708
        %vm711 = vcmp.eq.f32.partialorder %v626, 0.0
        %v712 = vand.u32 %v626, 2147483648
        %v713 = vsel %vm711, %v712, %v710
        %v714 = vrsqrt.pop %v628
        %v715 = vmul.f32 %v628, %v714
        %vm716 = vcmp.eq.f32.partialorder %v628, inf
        %v717 = vsel %vm716, %v628, %v715
        %vm718 = vcmp.eq.f32.partialorder %v628, 0.0
        %v719 = vand.u32 %v628, 2147483648
        %v720 = vsel %vm718, %v719, %v717
        %v721 = vrsqrt.pop %v630
        %v722 = vmul.f32 %v630, %v721
        %vm723 = vcmp.eq.f32.partialorder %v630, inf
        %v724 = vsel %vm723, %v630, %v722
        %vm725 = vcmp.eq.f32.partialorder %v630, 0.0
        %v726 = vand.u32 %v630, 2147483648
        %v727 = vsel %vm725, %v726, %v724
        %v728 = vrsqrt.pop %v632
        %v729 = vmul.f32 %v632, %v728
        %vm730 = vcmp.eq.f32.partialorder %v632, inf
        %v731 = vsel %vm730, %v632, %v729
        %vm732 = vcmp.eq.f32.partialorder %v632, 0.0
        %v733 = vand.u32 %v632, 2147483648
        %v734 = vsel %vm732, %v733, %v731
        %v735 = vrsqrt.pop %v634
        %v736 = vmul.f32 %v634, %v735
        %vm737 = vcmp.eq.f32.partialorder %v634, inf
        %v738 = vsel %vm737, %v634, %v736
        %vm739 = vcmp.eq.f32.partialorder %v634, 0.0
        %v740 = vand.u32 %v634, 2147483648
        %v741 = vsel %vm739, %v740, %v738
        %v742 = vrsqrt.pop %v636
        %v743 = vmul.f32 %v636, %v742
        %vm744 = vcmp.eq.f32.partialorder %v636, inf
        %v745 = vsel %vm744, %v636, %v743
        %vm746 = vcmp.eq.f32.partialorder %v636, 0.0
        %v747 = vand.u32 %v636, 2147483648
        %v748 = vsel %vm746, %v747, %v745
        %v749 = vmax.f32 %v643, 1e-15
        %v750 = vmax.f32 %v650, 1e-15
        %v751 = vmax.f32 %v657, 1e-15
        %v752 = vmax.f32 %v664, 1e-15
        %v753 = vmax.f32 %v671, 1e-15
        %v754 = vmax.f32 %v678, 1e-15
        %v755 = vmax.f32 %v685, 1e-15
        %v756 = vmax.f32 %v692, 1e-15
        %v757 = vmax.f32 %v699, 1e-15
        %v758 = vmax.f32 %v706, 1e-15
        %v759 = vmax.f32 %v713, 1e-15
        %v760 = vmax.f32 %v720, 1e-15
        %v761 = vmax.f32 %v727, 1e-15
        %v762 = vmax.f32 %v734, 1e-15
        %v763 = vmax.f32 %v741, 1e-15
        %v764 = vmax.f32 %v748, 1e-15
        %v765 = vrcp.pop %v428
        %v766 = vrcp.pop %v429
        %v767 = vrcp.pop %v430
        %v768 = vrcp.pop %v431
        %v769 = vrcp.pop %v432
        %v770 = vrcp.pop %v433
        %v771 = vrcp.pop %v434
        %v772 = vrcp.pop %v435
        %v773 = vrcp.pop %v436
        %v774 = vrcp.pop %v437
        %v775 = vrcp.pop %v438
        %v776 = vrcp.pop %v439
        %v777 = vrcp.pop %v440
        %v778 = vrcp.pop %v441
        %v779 = vrcp.pop %v442
        %v780 = vrcp.pop %v443
        %v781 = vmul.f32 %v749, %v765
        %v782 = vmul.f32 %v750, %v766
        %v783 = vmul.f32 %v751, %v767
        %v784 = vmul.f32 %v752, %v768
        %v785 = vmul.f32 %v753, %v769
        %v786 = vmul.f32 %v754, %v770
        %v787 = vmul.f32 %v755, %v771
        %v788 = vmul.f32 %v756, %v772
        %v789 = vmul.f32 %v757, %v773
        %v790 = vmul.f32 %v758, %v774
        %v791 = vmul.f32 %v759, %v775
        %v792 = vmul.f32 %v760, %v776
        %v793 = vmul.f32 %v761, %v777
        %v794 = vmul.f32 %v762, %v778
        %v795 = vmul.f32 %v763, %v779
        %v796 = vmul.f32 %v764, %v780
        %v797 = vmax.f32 %v428, -1.0
        %v798 = vmax.f32 %v429, -1.0
        %v799 = vmax.f32 %v430, -1.0
        %v800 = vmax.f32 %v431, -1.0
        %v801 = vmax.f32 %v432, -1.0
        %v802 = vmax.f32 %v433, -1.0
        %v803 = vmax.f32 %v434, -1.0
        %v804 = vmax.f32 %v435, -1.0
        %v805 = vmax.f32 %v436, -1.0
        %v806 = vmax.f32 %v437, -1.0
        %v807 = vmax.f32 %v438, -1.0
        %v808 = vmax.f32 %v439, -1.0
        %v809 = vmax.f32 %v440, -1.0
        %v810 = vmax.f32 %v441, -1.0
        %v811 = vmax.f32 %v442, -1.0
        %v812 = vmax.f32 %v443, -1.0
        %v813 = vmin.f32 %v797, 1.0
        %v814 = vmin.f32 %v798, 1.0
        %v815 = vmin.f32 %v799, 1.0
        %v816 = vmin.f32 %v800, 1.0
        %v817 = vmin.f32 %v801, 1.0
        %v818 = vmin.f32 %v802, 1.0
        %v819 = vmin.f32 %v803, 1.0
        %v820 = vmin.f32 %v804, 1.0
        %v821 = vmin.f32 %v805, 1.0
        %v822 = vmin.f32 %v806, 1.0
        %v823 = vmin.f32 %v807, 1.0
        %v824 = vmin.f32 %v808, 1.0
        %v825 = vmin.f32 %v809, 1.0
        %v826 = vmin.f32 %v810, 1.0
        %v827 = vmin.f32 %v811, 1.0
        %v828 = vmin.f32 %v812, 1.0
        %v829 = vadd.f32 %v813, 1.0
        %v830 = vlog2.pop %v829
        %v831 = vmul.f32 %v830, 0.6931472
        %v832 = vmul.f32 -0.5, %v813
        %v833 = vadd.f32 %v832, 1.0
        %v834 = vmul.f32 %v833, %v813
        %v835 = vand.u32 2147483647, %v813
        %vm836 = vcmp.lt.f32.partialorder %v835, 0.0004427343
        %v837 = vsel %vm836, %v834, %v831
        %v838 = vadd.f32 %v814, 1.0
        %v839 = vlog2.pop %v838
        %v840 = vmul.f32 %v839, 0.6931472
        %v841 = vmul.f32 -0.5, %v814
        %v842 = vadd.f32 %v841, 1.0
        %v843 = vmul.f32 %v842, %v814
        %v844 = vand.u32 2147483647, %v814
        %vm845 = vcmp.lt.f32.partialorder %v844, 0.0004427343
        %v846 = vsel %vm845, %v843, %v840
        %v847 = vadd.f32 %v815, 1.0
        %v848 = vlog2.pop %v847
        %v849 = vmul.f32 %v848, 0.6931472
        %v850 = vmul.f32 -0.5, %v815
        %v851 = vadd.f32 %v850, 1.0
        %v852 = vmul.f32 %v851, %v815
        %v853 = vand.u32 2147483647, %v815
        %vm854 = vcmp.lt.f32.partialorder %v853, 0.0004427343
        %v855 = vsel %vm854, %v852, %v849
        %v856 = vadd.f32 %v816, 1.0
        %v857 = vlog2.pop %v856
        %v858 = vmul.f32 %v857, 0.6931472
        %v859 = vmul.f32 -0.5, %v816
        %v860 = vadd.f32 %v859, 1.0
        %v861 = vmul.f32 %v860, %v816
        %v862 = vand.u32 2147483647, %v816
        %vm863 = vcmp.lt.f32.partialorder %v862, 0.0004427343
        %v864 = vsel %vm863, %v861, %v858
        %v865 = vadd.f32 %v817, 1.0
        %v866 = vlog2.pop %v865
        %v867 = vmul.f32 %v866, 0.6931472
        %v868 = vmul.f32 -0.5, %v817
        %v869 = vadd.f32 %v868, 1.0
        %v870 = vmul.f32 %v869, %v817
        %v871 = vand.u32 2147483647, %v817
        %vm872 = vcmp.lt.f32.partialorder %v871, 0.0004427343
        %v873 = vsel %vm872, %v870, %v867
        %v874 = vadd.f32 %v818, 1.0
        %v875 = vlog2.pop %v874
        %v876 = vmul.f32 %v875, 0.6931472
        %v877 = vmul.f32 -0.5, %v818
        %v878 = vadd.f32 %v877, 1.0
        %v879 = vmul.f32 %v878, %v818
        %v880 = vand.u32 2147483647, %v818
        %vm881 = vcmp.lt.f32.partialorder %v880, 0.0004427343
        %v882 = vsel %vm881, %v879, %v876
        %v883 = vadd.f32 %v819, 1.0
        %v884 = vlog2.pop %v883
        %v885 = vmul.f32 %v884, 0.6931472
        %v886 = vmul.f32 -0.5, %v819
        %v887 = vadd.f32 %v886, 1.0
        %v888 = vmul.f32 %v887, %v819
        %v889 = vand.u32 2147483647, %v819
        %vm890 = vcmp.lt.f32.partialorder %v889, 0.0004427343
        %v891 = vsel %vm890, %v888, %v885
        %v892 = vadd.f32 %v820, 1.0
        %v893 = vlog2.pop %v892
        %v894 = vmul.f32 %v893, 0.6931472
        %v895 = vmul.f32 -0.5, %v820
        %v896 = vadd.f32 %v895, 1.0
        %v897 = vmul.f32 %v896, %v820
        %v898 = vand.u32 2147483647, %v820
        %vm899 = vcmp.lt.f32.partialorder %v898, 0.0004427343
        %v900 = vsel %vm899, %v897, %v894
        %v901 = vadd.f32 %v821, 1.0
        %v902 = vlog2.pop %v901
        %v903 = vmul.f32 %v902, 0.6931472
        %v904 = vmul.f32 -0.5, %v821
        %v905 = vadd.f32 %v904, 1.0
        %v906 = vmul.f32 %v905, %v821
        %v907 = vand.u32 2147483647, %v821
        %vm908 = vcmp.lt.f32.partialorder %v907, 0.0004427343
        %v909 = vsel %vm908, %v906, %v903
        %v910 = vadd.f32 %v822, 1.0
        %v911 = vlog2.pop %v910
        %v912 = vmul.f32 %v911, 0.6931472
        %v913 = vmul.f32 -0.5, %v822
        %v914 = vadd.f32 %v913, 1.0
        %v915 = vmul.f32 %v914, %v822
        %v916 = vand.u32 2147483647, %v822
        %vm917 = vcmp.lt.f32.partialorder %v916, 0.0004427343
        %v918 = vsel %vm917, %v915, %v912
        %v919 = vadd.f32 %v823, 1.0
        %v920 = vlog2.pop %v919
        %v921 = vmul.f32 %v920, 0.6931472
        %v922 = vmul.f32 -0.5, %v823
        %v923 = vadd.f32 %v922, 1.0
        %v924 = vmul.f32 %v923, %v823
        %v925 = vand.u32 2147483647, %v823
        %vm926 = vcmp.lt.f32.partialorder %v925, 0.0004427343
        %v927 = vsel %vm926, %v924, %v921
        %v928 = vadd.f32 %v824, 1.0
        %v929 = vlog2.pop %v928
        %v930 = vmul.f32 %v929, 0.6931472
        %v931 = vmul.f32 -0.5, %v824
        %v932 = vadd.f32 %v931, 1.0
        %v933 = vmul.f32 %v932, %v824
        %v934 = vand.u32 2147483647, %v824
        %vm935 = vcmp.lt.f32.partialorder %v934, 0.0004427343
        %v936 = vsel %vm935, %v933, %v930
        %v937 = vadd.f32 %v825, 1.0
        %v938 = vlog2.pop %v937
        %v939 = vmul.f32 %v938, 0.6931472
        %v940 = vmul.f32 -0.5, %v825
        %v941 = vadd.f32 %v940, 1.0
        %v942 = vmul.f32 %v941, %v825
        %v943 = vand.u32 2147483647, %v825
        %vm944 = vcmp.lt.f32.partialorder %v943, 0.0004427343
        %v945 = vsel %vm944, %v942, %v939
        %v946 = vadd.f32 %v826, 1.0
        %v947 = vlog2.pop %v946
        %v948 = vmul.f32 %v947, 0.6931472
        %v949 = vmul.f32 -0.5, %v826
        %v950 = vadd.f32 %v949, 1.0
        %v951 = vmul.f32 %v950, %v826
        %v952 = vand.u32 2147483647, %v826
        %vm953 = vcmp.lt.f32.partialorder %v952, 0.0004427343
        %v954 = vsel %vm953, %v951, %v948
        %v955 = vadd.f32 %v827, 1.0
        %v956 = vlog2.pop %v955
        %v957 = vmul.f32 %v956, 0.6931472
        %v958 = vmul.f32 -0.5, %v827
        %v959 = vadd.f32 %v958, 1.0
        %v960 = vmul.f32 %v959, %v827
        %v961 = vand.u32 2147483647, %v827
        %vm962 = vcmp.lt.f32.partialorder %v961, 0.0004427343
        %v963 = vsel %vm962, %v960, %v957
        %v964 = vadd.f32 %v828, 1.0
        %v965 = vlog2.pop %v964
        %v966 = vmul.f32 %v965, 0.6931472
        %v967 = vmul.f32 -0.5, %v828
        %v968 = vadd.f32 %v967, 1.0
        %v969 = vmul.f32 %v968, %v828
        %v970 = vand.u32 2147483647, %v828
        %vm971 = vcmp.lt.f32.partialorder %v970, 0.0004427343
        %v972 = vsel %vm971, %v969, %v966
        %v973 = vsub.f32 0.0, %v813
        %v974 = vsub.f32 0.0, %v814
        %v975 = vsub.f32 0.0, %v815
        %v976 = vsub.f32 0.0, %v816
        %v977 = vsub.f32 0.0, %v817
        %v978 = vsub.f32 0.0, %v818
        %v979 = vsub.f32 0.0, %v819
        %v980 = vsub.f32 0.0, %v820
        %v981 = vsub.f32 0.0, %v821
        %v982 = vsub.f32 0.0, %v822
        %v983 = vsub.f32 0.0, %v823
        %v984 = vsub.f32 0.0, %v824
        %v985 = vsub.f32 0.0, %v825
        %v986 = vsub.f32 0.0, %v826
        %v987 = vsub.f32 0.0, %v827
        %v988 = vsub.f32 0.0, %v828
        %v989 = vadd.f32 %v973, 1.0
        %v990 = vlog2.pop %v989
        %v991 = vmul.f32 %v990, 0.6931472
        %v992 = vmul.f32 -0.5, %v973
        %v993 = vadd.f32 %v992, 1.0
        %v994 = vmul.f32 %v993, %v973
        %v995 = vand.u32 2147483647, %v973
        %vm996 = vcmp.lt.f32.partialorder %v995, 0.0004427343
        %v997 = vsel %vm996, %v994, %v991
        %v998 = vadd.f32 %v974, 1.0
        %v999 = vlog2.pop %v998
        %v1000 = vmul.f32 %v999, 0.6931472
        %v1001 = vmul.f32 -0.5, %v974
        %v1002 = vadd.f32 %v1001, 1.0
        %v1003 = vmul.f32 %v1002, %v974
        %v1004 = vand.u32 2147483647, %v974
        %vm1005 = vcmp.lt.f32.partialorder %v1004, 0.0004427343
        %v1006 = vsel %vm1005, %v1003, %v1000
        %v1007 = vadd.f32 %v975, 1.0
        %v1008 = vlog2.pop %v1007
        %v1009 = vmul.f32 %v1008, 0.6931472
        %v1010 = vmul.f32 -0.5, %v975
        %v1011 = vadd.f32 %v1010, 1.0
        %v1012 = vmul.f32 %v1011, %v975
        %v1013 = vand.u32 2147483647, %v975
        %vm1014 = vcmp.lt.f32.partialorder %v1013, 0.0004427343
        %v1015 = vsel %vm1014, %v1012, %v1009
        %v1016 = vadd.f32 %v976, 1.0
        %v1017 = vlog2.pop %v1016
        %v1018 = vmul.f32 %v1017, 0.6931472
        %v1019 = vmul.f32 -0.5, %v976
        %v1020 = vadd.f32 %v1019, 1.0
        %v1021 = vmul.f32 %v1020, %v976
        %v1022 = vand.u32 2147483647, %v976
        %vm1023 = vcmp.lt.f32.partialorder %v1022, 0.0004427343
        %v1024 = vsel %vm1023, %v1021, %v1018
        %v1025 = vadd.f32 %v977, 1.0
        %v1026 = vlog2.pop %v1025
        %v1027 = vmul.f32 %v1026, 0.6931472
        %v1028 = vmul.f32 -0.5, %v977
        %v1029 = vadd.f32 %v1028, 1.0
        %v1030 = vmul.f32 %v1029, %v977
        %v1031 = vand.u32 2147483647, %v977
        %vm1032 = vcmp.lt.f32.partialorder %v1031, 0.0004427343
        %v1033 = vsel %vm1032, %v1030, %v1027
        %v1034 = vadd.f32 %v978, 1.0
        %v1035 = vlog2.pop %v1034
        %v1036 = vmul.f32 %v1035, 0.6931472
        %v1037 = vmul.f32 -0.5, %v978
        %v1038 = vadd.f32 %v1037, 1.0
        %v1039 = vmul.f32 %v1038, %v978
        %v1040 = vand.u32 2147483647, %v978
        %vm1041 = vcmp.lt.f32.partialorder %v1040, 0.0004427343
        %v1042 = vsel %vm1041, %v1039, %v1036
        %v1043 = vadd.f32 %v979, 1.0
        %v1044 = vlog2.pop %v1043
        %v1045 = vmul.f32 %v1044, 0.6931472
        %v1046 = vmul.f32 -0.5, %v979
        %v1047 = vadd.f32 %v1046, 1.0
        %v1048 = vmul.f32 %v1047, %v979
        %v1049 = vand.u32 2147483647, %v979
        %vm1050 = vcmp.lt.f32.partialorder %v1049, 0.0004427343
        %v1051 = vsel %vm1050, %v1048, %v1045
        %v1052 = vadd.f32 %v980, 1.0
        %v1053 = vlog2.pop %v1052
        %v1054 = vmul.f32 %v1053, 0.6931472
        %v1055 = vmul.f32 -0.5, %v980
        %v1056 = vadd.f32 %v1055, 1.0
        %v1057 = vmul.f32 %v1056, %v980
        %v1058 = vand.u32 2147483647, %v980
        %vm1059 = vcmp.lt.f32.partialorder %v1058, 0.0004427343
        %v1060 = vsel %vm1059, %v1057, %v1054
        %v1061 = vadd.f32 %v981, 1.0
        %v1062 = vlog2.pop %v1061
        %v1063 = vmul.f32 %v1062, 0.6931472
        %v1064 = vmul.f32 -0.5, %v981
        %v1065 = vadd.f32 %v1064, 1.0
        %v1066 = vmul.f32 %v1065, %v981
        %v1067 = vand.u32 2147483647, %v981
        %vm1068 = vcmp.lt.f32.partialorder %v1067, 0.0004427343
        %v1069 = vsel %vm1068, %v1066, %v1063
        %v1070 = vadd.f32 %v982, 1.0
        %v1071 = vlog2.pop %v1070
        %v1072 = vmul.f32 %v1071, 0.6931472
        %v1073 = vmul.f32 -0.5, %v982
        %v1074 = vadd.f32 %v1073, 1.0
        %v1075 = vmul.f32 %v1074, %v982
        %v1076 = vand.u32 2147483647, %v982
        %vm1077 = vcmp.lt.f32.partialorder %v1076, 0.0004427343
        %v1078 = vsel %vm1077, %v1075, %v1072
        %v1079 = vadd.f32 %v983, 1.0
        %v1080 = vlog2.pop %v1079
        %v1081 = vmul.f32 %v1080, 0.6931472
        %v1082 = vmul.f32 -0.5, %v983
        %v1083 = vadd.f32 %v1082, 1.0
        %v1084 = vmul.f32 %v1083, %v983
        %v1085 = vand.u32 2147483647, %v983
        %vm1086 = vcmp.lt.f32.partialorder %v1085, 0.0004427343
        %v1087 = vsel %vm1086, %v1084, %v1081
        %v1088 = vadd.f32 %v984, 1.0
        %v1089 = vlog2.pop %v1088
        %v1090 = vmul.f32 %v1089, 0.6931472
        %v1091 = vmul.f32 -0.5, %v984
        %v1092 = vadd.f32 %v1091, 1.0
        %v1093 = vmul.f32 %v1092, %v984
        %v1094 = vand.u32 2147483647, %v984
        %vm1095 = vcmp.lt.f32.partialorder %v1094, 0.0004427343
        %v1096 = vsel %vm1095, %v1093, %v1090
        %v1097 = vadd.f32 %v985, 1.0
        %v1098 = vlog2.pop %v1097
        %v1099 = vmul.f32 %v1098, 0.6931472
        %v1100 = vmul.f32 -0.5, %v985
        %v1101 = vadd.f32 %v1100, 1.0
        %v1102 = vmul.f32 %v1101, %v985
        %v1103 = vand.u32 2147483647, %v985
        %vm1104 = vcmp.lt.f32.partialorder %v1103, 0.0004427343
        %v1105 = vsel %vm1104, %v1102, %v1099
        %v1106 = vadd.f32 %v986, 1.0
        %v1107 = vlog2.pop %v1106
        %v1108 = vmul.f32 %v1107, 0.6931472
        %v1109 = vmul.f32 -0.5, %v986
        %v1110 = vadd.f32 %v1109, 1.0
        %v1111 = vmul.f32 %v1110, %v986
        %v1112 = vand.u32 2147483647, %v986
        %vm1113 = vcmp.lt.f32.partialorder %v1112, 0.0004427343
        %v1114 = vsel %vm1113, %v1111, %v1108
        %v1115 = vadd.f32 %v987, 1.0
        %v1116 = vlog2.pop %v1115
        %v1117 = vmul.f32 %v1116, 0.6931472
        %v1118 = vmul.f32 -0.5, %v987
        %v1119 = vadd.f32 %v1118, 1.0
        %v1120 = vmul.f32 %v1119, %v987
        %v1121 = vand.u32 2147483647, %v987
        %vm1122 = vcmp.lt.f32.partialorder %v1121, 0.0004427343
        %v1123 = vsel %vm1122, %v1120, %v1117
        %v1124 = vadd.f32 %v988, 1.0
        %v1125 = vlog2.pop %v1124
        %v1126 = vmul.f32 %v1125, 0.6931472
        %v1127 = vmul.f32 -0.5, %v988
        %v1128 = vadd.f32 %v1127, 1.0
        %v1129 = vmul.f32 %v1128, %v988
        %v1130 = vand.u32 2147483647, %v988
        %vm1131 = vcmp.lt.f32.partialorder %v1130, 0.0004427343
        %v1132 = vsel %vm1131, %v1129, %v1126
        %v1133 = vsub.f32 %v837, %v997
        %v1134 = vsub.f32 %v846, %v1006
        %v1135 = vsub.f32 %v855, %v1015
        %v1136 = vsub.f32 %v864, %v1024
        %v1137 = vsub.f32 %v873, %v1033
        %v1138 = vsub.f32 %v882, %v1042
        %v1139 = vsub.f32 %v891, %v1051
        %v1140 = vsub.f32 %v900, %v1060
        %v1141 = vsub.f32 %v909, %v1069
        %v1142 = vsub.f32 %v918, %v1078
        %v1143 = vsub.f32 %v927, %v1087
        %v1144 = vsub.f32 %v936, %v1096
        %v1145 = vsub.f32 %v945, %v1105
        %v1146 = vsub.f32 %v954, %v1114
        %v1147 = vsub.f32 %v963, %v1123
        %v1148 = vsub.f32 %v972, %v1132
        %v1149 = vmul.f32 %v1133, 0.5
        %v1150 = vmul.f32 %v1134, 0.5
        %v1151 = vmul.f32 %v1135, 0.5
        %v1152 = vmul.f32 %v1136, 0.5
        %v1153 = vmul.f32 %v1137, 0.5
        %v1154 = vmul.f32 %v1138, 0.5
        %v1155 = vmul.f32 %v1139, 0.5
        %v1156 = vmul.f32 %v1140, 0.5
        %v1157 = vmul.f32 %v1141, 0.5
        %v1158 = vmul.f32 %v1142, 0.5
        %v1159 = vmul.f32 %v1143, 0.5
        %v1160 = vmul.f32 %v1144, 0.5
        %v1161 = vmul.f32 %v1145, 0.5
        %v1162 = vmul.f32 %v1146, 0.5
        %v1163 = vmul.f32 %v1147, 0.5
        %v1164 = vmul.f32 %v1148, 0.5
        %v1165 = vmul.f32 %v781, %v1149
        %v1166 = vmul.f32 %v782, %v1150
        %v1167 = vmul.f32 %v783, %v1151
        %v1168 = vmul.f32 %v784, %v1152
        %v1169 = vmul.f32 %v785, %v1153
        %v1170 = vmul.f32 %v786, %v1154
        %v1171 = vmul.f32 %v787, %v1155
        %v1172 = vmul.f32 %v788, %v1156
        %v1173 = vmul.f32 %v789, %v1157
        %v1174 = vmul.f32 %v790, %v1158
        %v1175 = vmul.f32 %v791, %v1159
        %v1176 = vmul.f32 %v792, %v1160
        %v1177 = vmul.f32 %v793, %v1161
        %v1178 = vmul.f32 %v794, %v1162
        %v1179 = vmul.f32 %v795, %v1163
        %v1180 = vmul.f32 %v796, %v1164
        %v1181 = vtanh.pop %v1165
        %v1182 = vtanh.pop %v1166
        %v1183 = vtanh.pop %v1167
        %v1184 = vtanh.pop %v1168
        %v1185 = vtanh.pop %v1169
        %v1186 = vtanh.pop %v1170
        %v1187 = vtanh.pop %v1171
        %v1188 = vtanh.pop %v1172
        %v1189 = vtanh.pop %v1173
        %v1190 = vtanh.pop %v1174
        %v1191 = vtanh.pop %v1175
        %v1192 = vtanh.pop %v1176
        %v1193 = vtanh.pop %v1177
        %v1194 = vtanh.pop %v1178
        %v1195 = vtanh.pop %v1179
        %v1196 = vtanh.pop %v1180
        %v1197 = vrcp.pop %v749
        %v1198 = vrcp.pop %v750
        %v1199 = vrcp.pop %v751
        %v1200 = vrcp.pop %v752
        %v1201 = vrcp.pop %v753
        %v1202 = vrcp.pop %v754
        %v1203 = vrcp.pop %v755
        %v1204 = vrcp.pop %v756
        %v1205 = vrcp.pop %v757
        %v1206 = vrcp.pop %v758
        %v1207 = vrcp.pop %v759
        %v1208 = vrcp.pop %v760
        %v1209 = vrcp.pop %v761
        %v1210 = vrcp.pop %v762
        %v1211 = vrcp.pop %v763
        %v1212 = vrcp.pop %v764
        %v1213 = vmul.f32 %v1181, %v1197
        %v1214 = vmul.f32 %v1182, %v1198
        %v1215 = vmul.f32 %v1183, %v1199
        %v1216 = vmul.f32 %v1184, %v1200
        %v1217 = vmul.f32 %v1185, %v1201
        %v1218 = vmul.f32 %v1186, %v1202
        %v1219 = vmul.f32 %v1187, %v1203
        %v1220 = vmul.f32 %v1188, %v1204
        %v1221 = vmul.f32 %v1189, %v1205
        %v1222 = vmul.f32 %v1190, %v1206
        %v1223 = vmul.f32 %v1191, %v1207
        %v1224 = vmul.f32 %v1192, %v1208
        %v1225 = vmul.f32 %v1193, %v1209
        %v1226 = vmul.f32 %v1194, %v1210
        %v1227 = vmul.f32 %v1195, %v1211
        %v1228 = vmul.f32 %v1196, %v1212
        %v1229 = vmul.f32 %v1213, %v511
        %v1230 = vmul.f32 %v1214, %v516
        %v1231 = vmul.f32 %v1215, %v521
        %v1232 = vmul.f32 %v1216, %v526
        %v1233 = vmul.f32 %v1217, %v531
        %v1234 = vmul.f32 %v1218, %v536
        %v1235 = vmul.f32 %v1219, %v541
        %v1236 = vmul.f32 %v1220, %v546
        %v1237 = vmul.f32 %v1221, %v551
        %v1238 = vmul.f32 %v1222, %v556
        %v1239 = vmul.f32 %v1223, %v561
        %v1240 = vmul.f32 %v1224, %v566
        %v1241 = vmul.f32 %v1225, %v571
        %v1242 = vmul.f32 %v1226, %v576
        %v1243 = vmul.f32 %v1227, %v581
        %v1244 = vmul.f32 %v1228, %v586
        %vm1245 = vcmp.eq.f32.partialorder %v606, 0.0
        %vm1246 = vcmp.eq.f32.partialorder %v608, 0.0
        %vm1247 = vcmp.eq.f32.partialorder %v610, 0.0
        %vm1248 = vcmp.eq.f32.partialorder %v612, 0.0
        %vm1249 = vcmp.eq.f32.partialorder %v614, 0.0
        %vm1250 = vcmp.eq.f32.partialorder %v616, 0.0
        %vm1251 = vcmp.eq.f32.partialorder %v618, 0.0
        %vm1252 = vcmp.eq.f32.partialorder %v620, 0.0
        %vm1253 = vcmp.eq.f32.partialorder %v622, 0.0
        %vm1254 = vcmp.eq.f32.partialorder %v624, 0.0
        %vm1255 = vcmp.eq.f32.partialorder %v626, 0.0
        %vm1256 = vcmp.eq.f32.partialorder %v628, 0.0
        %vm1257 = vcmp.eq.f32.partialorder %v630, 0.0
        %vm1258 = vcmp.eq.f32.partialorder %v632, 0.0
        %vm1259 = vcmp.eq.f32.partialorder %v634, 0.0
        %vm1260 = vcmp.eq.f32.partialorder %v636, 0.0
        %v1261 = vsel %vm1245, 1, 0
        %v1262 = vsel %vm1246, 1, 0
        %v1263 = vsel %vm1247, 1, 0
        %v1264 = vsel %vm1248, 1, 0
        %v1265 = vsel %vm1249, 1, 0
        %v1266 = vsel %vm1250, 1, 0
        %v1267 = vsel %vm1251, 1, 0
        %v1268 = vsel %vm1252, 1, 0
        %v1269 = vsel %vm1253, 1, 0
        %v1270 = vsel %vm1254, 1, 0
        %v1271 = vsel %vm1255, 1, 0
        %v1272 = vsel %vm1256, 1, 0
        %v1273 = vsel %vm1257, 1, 0
        %v1274 = vsel %vm1258, 1, 0
        %v1275 = vsel %vm1259, 1, 0
        %v1276 = vsel %vm1260, 1, 0
        %vm1277 = vcmp.eq.s32.totalorder %v1261, 1
        %vm1278 = vcmp.eq.s32.totalorder %v1262, 1
        %vm1279 = vcmp.eq.s32.totalorder %v1263, 1
        %vm1280 = vcmp.eq.s32.totalorder %v1264, 1
        %vm1281 = vcmp.eq.s32.totalorder %v1265, 1
        %vm1282 = vcmp.eq.s32.totalorder %v1266, 1
        %vm1283 = vcmp.eq.s32.totalorder %v1267, 1
        %vm1284 = vcmp.eq.s32.totalorder %v1268, 1
        %vm1285 = vcmp.eq.s32.totalorder %v1269, 1
        %vm1286 = vcmp.eq.s32.totalorder %v1270, 1
        %vm1287 = vcmp.eq.s32.totalorder %v1271, 1
        %vm1288 = vcmp.eq.s32.totalorder %v1272, 1
        %vm1289 = vcmp.eq.s32.totalorder %v1273, 1
        %vm1290 = vcmp.eq.s32.totalorder %v1274, 1
        %vm1291 = vcmp.eq.s32.totalorder %v1275, 1
        %vm1292 = vcmp.eq.s32.totalorder %v1276, 1
        %v1293 = vsel %vm1277, 0.0, %v1229
        %v1294 = vsel %vm1278, 0.0, %v1230
        %v1295 = vsel %vm1279, 0.0, %v1231
        %v1296 = vsel %vm1280, 0.0, %v1232
        %v1297 = vsel %vm1281, 0.0, %v1233
        %v1298 = vsel %vm1282, 0.0, %v1234
        %v1299 = vsel %vm1283, 0.0, %v1235
        %v1300 = vsel %vm1284, 0.0, %v1236
        %v1301 = vsel %vm1285, 0.0, %v1237
        %v1302 = vsel %vm1286, 0.0, %v1238
        %v1303 = vsel %vm1287, 0.0, %v1239
        %v1304 = vsel %vm1288, 0.0, %v1240
        %v1305 = vsel %vm1289, 0.0, %v1241
        %v1306 = vsel %vm1290, 0.0, %v1242
        %v1307 = vsel %vm1291, 0.0, %v1243
        %v1308 = vsel %vm1292, 0.0, %v1244
        %v1309 = vmax.f32 %v1181, 1e-15
        %v1310 = vmax.f32 %v1182, 1e-15
        %v1311 = vmax.f32 %v1183, 1e-15
        %v1312 = vmax.f32 %v1184, 1e-15
        %v1313 = vmax.f32 %v1185, 1e-15
        %v1314 = vmax.f32 %v1186, 1e-15
        %v1315 = vmax.f32 %v1187, 1e-15
        %v1316 = vmax.f32 %v1188, 1e-15
        %v1317 = vmax.f32 %v1189, 1e-15
        %v1318 = vmax.f32 %v1190, 1e-15
        %v1319 = vmax.f32 %v1191, 1e-15
        %v1320 = vmax.f32 %v1192, 1e-15
        %v1321 = vmax.f32 %v1193, 1e-15
        %v1322 = vmax.f32 %v1194, 1e-15
        %v1323 = vmax.f32 %v1195, 1e-15
        %v1324 = vmax.f32 %v1196, 1e-15
        %v1325 = vsel %vm1245, 1e-15, %v1309
        %v1326 = vsel %vm1246, 1e-15, %v1310
        %v1327 = vsel %vm1247, 1e-15, %v1311
        %v1328 = vsel %vm1248, 1e-15, %v1312
        %v1329 = vsel %vm1249, 1e-15, %v1313
        %v1330 = vsel %vm1250, 1e-15, %v1314
        %v1331 = vsel %vm1251, 1e-15, %v1315
        %v1332 = vsel %vm1252, 1e-15, %v1316
        %v1333 = vsel %vm1253, 1e-15, %v1317
        %v1334 = vsel %vm1254, 1e-15, %v1318
        %v1335 = vsel %vm1255, 1e-15, %v1319
        %v1336 = vsel %vm1256, 1e-15, %v1320
        %v1337 = vsel %vm1257, 1e-15, %v1321
        %v1338 = vsel %vm1258, 1e-15, %v1322
        %v1339 = vsel %vm1259, 1e-15, %v1323
        %v1340 = vsel %vm1260, 1e-15, %v1324
        %vm1341 = vcmp.gt.f32.partialorder %v1325, 0.996
        %vm1342 = vcmp.gt.f32.partialorder %v1326, 0.996
        %vm1343 = vcmp.gt.f32.partialorder %v1327, 0.996
        %vm1344 = vcmp.gt.f32.partialorder %v1328, 0.996
        %vm1345 = vcmp.gt.f32.partialorder %v1329, 0.996
        %vm1346 = vcmp.gt.f32.partialorder %v1330, 0.996
        %vm1347 = vcmp.gt.f32.partialorder %v1331, 0.996
        %vm1348 = vcmp.gt.f32.partialorder %v1332, 0.996
        %vm1349 = vcmp.gt.f32.partialorder %v1333, 0.996
        %vm1350 = vcmp.gt.f32.partialorder %v1334, 0.996
        %vm1351 = vcmp.gt.f32.partialorder %v1335, 0.996
        %vm1352 = vcmp.gt.f32.partialorder %v1336, 0.996
        %vm1353 = vcmp.gt.f32.partialorder %v1337, 0.996
        %vm1354 = vcmp.gt.f32.partialorder %v1338, 0.996
        %vm1355 = vcmp.gt.f32.partialorder %v1339, 0.996
        %vm1356 = vcmp.gt.f32.partialorder %v1340, 0.996
        %v1357 = vrcp.pop %v1325
        %v1358 = vrcp.pop %v1326
        %v1359 = vrcp.pop %v1327
        %v1360 = vrcp.pop %v1328
        %v1361 = vrcp.pop %v1329
        %v1362 = vrcp.pop %v1330
        %v1363 = vrcp.pop %v1331
        %v1364 = vrcp.pop %v1332
        %v1365 = vrcp.pop %v1333
        %v1366 = vrcp.pop %v1334
        %v1367 = vrcp.pop %v1335
        %v1368 = vrcp.pop %v1336
        %v1369 = vrcp.pop %v1337
        %v1370 = vrcp.pop %v1338
        %v1371 = vrcp.pop %v1339
        %v1372 = vrcp.pop %v1340
        %v1373 = vmul.f32 %v1357, 0.996
        %v1374 = vmul.f32 %v1358, 0.996
        %v1375 = vmul.f32 %v1359, 0.996
        %v1376 = vmul.f32 %v1360, 0.996
        %v1377 = vmul.f32 %v1361, 0.996
        %v1378 = vmul.f32 %v1362, 0.996
        %v1379 = vmul.f32 %v1363, 0.996
        %v1380 = vmul.f32 %v1364, 0.996
        %v1381 = vmul.f32 %v1365, 0.996
        %v1382 = vmul.f32 %v1366, 0.996
        %v1383 = vmul.f32 %v1367, 0.996
        %v1384 = vmul.f32 %v1368, 0.996
        %v1385 = vmul.f32 %v1369, 0.996
        %v1386 = vmul.f32 %v1370, 0.996
        %v1387 = vmul.f32 %v1371, 0.996
        %v1388 = vmul.f32 %v1372, 0.996
        %v1389 = vsel %vm1341, %v1373, 1.0
        %v1390 = vsel %vm1342, %v1374, 1.0
        %v1391 = vsel %vm1343, %v1375, 1.0
        %v1392 = vsel %vm1344, %v1376, 1.0
        %v1393 = vsel %vm1345, %v1377, 1.0
        %v1394 = vsel %vm1346, %v1378, 1.0
        %v1395 = vsel %vm1347, %v1379, 1.0
        %v1396 = vsel %vm1348, %v1380, 1.0
        %v1397 = vsel %vm1349, %v1381, 1.0
        %v1398 = vsel %vm1350, %v1382, 1.0
        %v1399 = vsel %vm1351, %v1383, 1.0
        %v1400 = vsel %vm1352, %v1384, 1.0
        %v1401 = vsel %vm1353, %v1385, 1.0
        %v1402 = vsel %vm1354, %v1386, 1.0
        %v1403 = vsel %vm1355, %v1387, 1.0
        %v1404 = vsel %vm1356, %v1388, 1.0
        %v1405 = vmul.f32 %v1293, %v1389
        %v1406 = vmul.f32 %v1294, %v1390
        %v1407 = vmul.f32 %v1295, %v1391
        %v1408 = vmul.f32 %v1296, %v1392
        %v1409 = vmul.f32 %v1297, %v1393
        %v1410 = vmul.f32 %v1298, %v1394
        %v1411 = vmul.f32 %v1299, %v1395
        %v1412 = vmul.f32 %v1300, %v1396
        %v1413 = vmul.f32 %v1301, %v1397
        %v1414 = vmul.f32 %v1302, %v1398
        %v1415 = vmul.f32 %v1303, %v1399
        %v1416 = vmul.f32 %v1304, %v1400
        %v1417 = vmul.f32 %v1305, %v1401
        %v1418 = vmul.f32 %v1306, %v1402
        %v1419 = vmul.f32 %v1307, %v1403
        %v1420 = vmul.f32 %v1308, %v1404
        %v1421 = vmul.f32 %v1405, %v1405
        %v1422 = vmul.f32 %v1406, %v1406
        %v1423 = vmul.f32 %v1407, %v1407
        %v1424 = vmul.f32 %v1408, %v1408
        %v1425 = vmul.f32 %v1409, %v1409
        %v1426 = vmul.f32 %v1410, %v1410
        %v1427 = vmul.f32 %v1411, %v1411
        %v1428 = vmul.f32 %v1412, %v1412
        %v1429 = vmul.f32 %v1413, %v1413
        %v1430 = vmul.f32 %v1414, %v1414
        %v1431 = vmul.f32 %v1415, %v1415
        %v1432 = vmul.f32 %v1416, %v1416
        %v1433 = vmul.f32 %v1417, %v1417
        %v1434 = vmul.f32 %v1418, %v1418
        %v1435 = vmul.f32 %v1419, %v1419
        %v1436 = vmul.f32 %v1420, %v1420
        %1437 = vadd.xlane.f32.xlu0 %v1421
        %v1438 = vpop.xlane.xlu0 %1437
        %1439 = vadd.xlane.f32.xlu0 %v1422
        %v1440 = vpop.xlane.xlu0 %1439
        %1441 = vadd.xlane.f32.xlu0 %v1423
        %v1442 = vpop.xlane.xlu0 %1441
        %1443 = vadd.xlane.f32.xlu0 %v1424
        %v1444 = vpop.xlane.xlu0 %1443
        %1445 = vadd.xlane.f32.xlu0 %v1425
        %v1446 = vpop.xlane.xlu0 %1445
        %1447 = vadd.xlane.f32.xlu0 %v1426
        %v1448 = vpop.xlane.xlu0 %1447
        %1449 = vadd.xlane.f32.xlu0 %v1427
        %v1450 = vpop.xlane.xlu0 %1449
        %1451 = vadd.xlane.f32.xlu0 %v1428
        %v1452 = vpop.xlane.xlu0 %1451
        %1453 = vadd.xlane.f32.xlu0 %v1429
        %v1454 = vpop.xlane.xlu0 %1453
        %1455 = vadd.xlane.f32.xlu0 %v1430
        %v1456 = vpop.xlane.xlu0 %1455
        %1457 = vadd.xlane.f32.xlu0 %v1431
        %v1458 = vpop.xlane.xlu0 %1457
        %1459 = vadd.xlane.f32.xlu0 %v1432
        %v1460 = vpop.xlane.xlu0 %1459
        %1461 = vadd.xlane.f32.xlu0 %v1433
        %v1462 = vpop.xlane.xlu0 %1461
        %1463 = vadd.xlane.f32.xlu0 %v1434
        %v1464 = vpop.xlane.xlu0 %1463
        %1465 = vadd.xlane.f32.xlu0 %v1435
        %v1466 = vpop.xlane.xlu0 %1465
        %1467 = vadd.xlane.f32.xlu0 %v1436
        %v1468 = vpop.xlane.xlu0 %1467
        %v1470 = vlaneseq
        %v1471 = vshrl.u32 %v1470, 7
        %v1472 = vsub.s32 0, %v1471
        %v1473 = vrot.slane %v266, %v1472
        %v1475 = vmul.f32 %v1405, %v1473
        %v1476 = vmul.f32 %v1406, %v1473
        %v1477 = vmul.f32 %v1407, %v1473
        %v1478 = vmul.f32 %v1408, %v1473
        %v1479 = vmul.f32 %v1409, %v1473
        %v1480 = vmul.f32 %v1410, %v1473
        %v1481 = vmul.f32 %v1411, %v1473
        %v1482 = vmul.f32 %v1412, %v1473
        %v1483 = vmul.f32 %v1413, %v1473
        %v1484 = vmul.f32 %v1414, %v1473
        %v1485 = vmul.f32 %v1415, %v1473
        %v1486 = vmul.f32 %v1416, %v1473
        %v1487 = vmul.f32 %v1417, %v1473
        %v1488 = vmul.f32 %v1418, %v1473
        %v1489 = vmul.f32 %v1419, %v1473
        %v1490 = vmul.f32 %v1420, %v1473
        %1491 = vadd.xlane.f32.xlu0 %v1475
        %v1492 = vpop.xlane.xlu0 %1491
        %1493 = vadd.xlane.f32.xlu0 %v1476
        %v1494 = vpop.xlane.xlu0 %1493
        %1495 = vadd.xlane.f32.xlu0 %v1477
        %v1496 = vpop.xlane.xlu0 %1495
        %1497 = vadd.xlane.f32.xlu0 %v1478
        %v1498 = vpop.xlane.xlu0 %1497
        %1499 = vadd.xlane.f32.xlu0 %v1479
        %v1500 = vpop.xlane.xlu0 %1499
        %1501 = vadd.xlane.f32.xlu0 %v1480
        %v1502 = vpop.xlane.xlu0 %1501
        %1503 = vadd.xlane.f32.xlu0 %v1481
        %v1504 = vpop.xlane.xlu0 %1503
        %1505 = vadd.xlane.f32.xlu0 %v1482
        %v1506 = vpop.xlane.xlu0 %1505
        %1507 = vadd.xlane.f32.xlu0 %v1483
        %v1508 = vpop.xlane.xlu0 %1507
        %1509 = vadd.xlane.f32.xlu0 %v1484
        %v1510 = vpop.xlane.xlu0 %1509
        %1511 = vadd.xlane.f32.xlu0 %v1485
        %v1512 = vpop.xlane.xlu0 %1511
        %1513 = vadd.xlane.f32.xlu0 %v1486
        %v1514 = vpop.xlane.xlu0 %1513
        %1515 = vadd.xlane.f32.xlu0 %v1487
        %v1516 = vpop.xlane.xlu0 %1515
        %1517 = vadd.xlane.f32.xlu0 %v1488
        %v1518 = vpop.xlane.xlu0 %1517
        %1519 = vadd.xlane.f32.xlu0 %v1489
        %v1520 = vpop.xlane.xlu0 %1519
        %1521 = vadd.xlane.f32.xlu0 %v1490
        %v1522 = vpop.xlane.xlu0 %1521
        %v1523 = vmul.f32 %v1492, 2.0
        %v1524 = vmul.f32 %v1494, 2.0
        %v1525 = vmul.f32 %v1496, 2.0
        %v1526 = vmul.f32 %v1498, 2.0
        %v1527 = vmul.f32 %v1500, 2.0
        %v1528 = vmul.f32 %v1502, 2.0
        %v1529 = vmul.f32 %v1504, 2.0
        %v1530 = vmul.f32 %v1506, 2.0
        %v1531 = vmul.f32 %v1508, 2.0
        %v1532 = vmul.f32 %v1510, 2.0
        %v1533 = vmul.f32 %v1512, 2.0
        %v1534 = vmul.f32 %v1514, 2.0
        %v1535 = vmul.f32 %v1516, 2.0
        %v1536 = vmul.f32 %v1518, 2.0
        %v1537 = vmul.f32 %v1520, 2.0
        %v1538 = vmul.f32 %v1522, 2.0
        %v1539 = vadd.f32 %v1523, 1.0
        %v1540 = vadd.f32 %v1524, 1.0
        %v1541 = vadd.f32 %v1525, 1.0
        %v1542 = vadd.f32 %v1526, 1.0
        %v1543 = vadd.f32 %v1527, 1.0
        %v1544 = vadd.f32 %v1528, 1.0
        %v1545 = vadd.f32 %v1529, 1.0
        %v1546 = vadd.f32 %v1530, 1.0
        %v1547 = vadd.f32 %v1531, 1.0
        %v1548 = vadd.f32 %v1532, 1.0
        %v1549 = vadd.f32 %v1533, 1.0
        %v1550 = vadd.f32 %v1534, 1.0
        %v1551 = vadd.f32 %v1535, 1.0
        %v1552 = vadd.f32 %v1536, 1.0
        %v1553 = vadd.f32 %v1537, 1.0
        %v1554 = vadd.f32 %v1538, 1.0
        %v1555 = vstv %s267
        %v1556 = vadd.f32 %v1539, %v1555
        %v1557 = vadd.f32 %v1540, %v1555
        %v1558 = vadd.f32 %v1541, %v1555
        %v1559 = vadd.f32 %v1542, %v1555
        %v1560 = vadd.f32 %v1543, %v1555
        %v1561 = vadd.f32 %v1544, %v1555
        %v1562 = vadd.f32 %v1545, %v1555
        %v1563 = vadd.f32 %v1546, %v1555
        %v1564 = vadd.f32 %v1547, %v1555
        %v1565 = vadd.f32 %v1548, %v1555
        %v1566 = vadd.f32 %v1549, %v1555
        %v1567 = vadd.f32 %v1550, %v1555
        %v1568 = vadd.f32 %v1551, %v1555
        %v1569 = vadd.f32 %v1552, %v1555
        %v1570 = vadd.f32 %v1553, %v1555
        %v1571 = vadd.f32 %v1554, %v1555
        %v1572 = vmul.f32 %v1556, %v1405
        %v1573 = vmul.f32 %v1557, %v1406
        %v1574 = vmul.f32 %v1558, %v1407
        %v1575 = vmul.f32 %v1559, %v1408
        %v1576 = vmul.f32 %v1560, %v1409
        %v1577 = vmul.f32 %v1561, %v1410
        %v1578 = vmul.f32 %v1562, %v1411
        %v1579 = vmul.f32 %v1563, %v1412
        %v1580 = vmul.f32 %v1564, %v1413
        %v1581 = vmul.f32 %v1565, %v1414
        %v1582 = vmul.f32 %v1566, %v1415
        %v1583 = vmul.f32 %v1567, %v1416
        %v1584 = vmul.f32 %v1568, %v1417
        %v1585 = vmul.f32 %v1569, %v1418
        %v1586 = vmul.f32 %v1570, %v1419
        %v1587 = vmul.f32 %v1571, %v1420
        %v1588 = vsub.f32 1.0, %v1438
        %v1589 = vsub.f32 1.0, %v1440
        %v1590 = vsub.f32 1.0, %v1442
        %v1591 = vsub.f32 1.0, %v1444
        %v1592 = vsub.f32 1.0, %v1446
        %v1593 = vsub.f32 1.0, %v1448
        %v1594 = vsub.f32 1.0, %v1450
        %v1595 = vsub.f32 1.0, %v1452
        %v1596 = vsub.f32 1.0, %v1454
        %v1597 = vsub.f32 1.0, %v1456
        %v1598 = vsub.f32 1.0, %v1458
        %v1599 = vsub.f32 1.0, %v1460
        %v1600 = vsub.f32 1.0, %v1462
        %v1601 = vsub.f32 1.0, %v1464
        %v1602 = vsub.f32 1.0, %v1466
        %v1603 = vsub.f32 1.0, %v1468
        %v1604 = vmul.f32 %v1588, %v1473
        %v1605 = vmul.f32 %v1589, %v1473
        %v1606 = vmul.f32 %v1590, %v1473
        %v1607 = vmul.f32 %v1591, %v1473
        %v1608 = vmul.f32 %v1592, %v1473
        %v1609 = vmul.f32 %v1593, %v1473
        %v1610 = vmul.f32 %v1594, %v1473
        %v1611 = vmul.f32 %v1595, %v1473
        %v1612 = vmul.f32 %v1596, %v1473
        %v1613 = vmul.f32 %v1597, %v1473
        %v1614 = vmul.f32 %v1598, %v1473
        %v1615 = vmul.f32 %v1599, %v1473
        %v1616 = vmul.f32 %v1600, %v1473
        %v1617 = vmul.f32 %v1601, %v1473
        %v1618 = vmul.f32 %v1602, %v1473
        %v1619 = vmul.f32 %v1603, %v1473
        %v1620 = vadd.f32 %v1572, %v1604
        %v1621 = vadd.f32 %v1573, %v1605
        %v1622 = vadd.f32 %v1574, %v1606
        %v1623 = vadd.f32 %v1575, %v1607
        %v1624 = vadd.f32 %v1576, %v1608
        %v1625 = vadd.f32 %v1577, %v1609
        %v1626 = vadd.f32 %v1578, %v1610
        %v1627 = vadd.f32 %v1579, %v1611
        %v1628 = vadd.f32 %v1580, %v1612
        %v1629 = vadd.f32 %v1581, %v1613
        %v1630 = vadd.f32 %v1582, %v1614
        %v1631 = vadd.f32 %v1583, %v1615
        %v1632 = vadd.f32 %v1584, %v1616
        %v1633 = vadd.f32 %v1585, %v1617
        %v1634 = vadd.f32 %v1586, %v1618
        %v1635 = vadd.f32 %v1587, %v1619
        %v1636 = vmul.f32 %v1438, %v1555
        %v1637 = vmul.f32 %v1440, %v1555
        %v1638 = vmul.f32 %v1442, %v1555
        %v1639 = vmul.f32 %v1444, %v1555
        %v1640 = vmul.f32 %v1446, %v1555
        %v1641 = vmul.f32 %v1448, %v1555
        %v1642 = vmul.f32 %v1450, %v1555
        %v1643 = vmul.f32 %v1452, %v1555
        %v1644 = vmul.f32 %v1454, %v1555
        %v1645 = vmul.f32 %v1456, %v1555
        %v1646 = vmul.f32 %v1458, %v1555
        %v1647 = vmul.f32 %v1460, %v1555
        %v1648 = vmul.f32 %v1462, %v1555
        %v1649 = vmul.f32 %v1464, %v1555
        %v1650 = vmul.f32 %v1466, %v1555
        %v1651 = vmul.f32 %v1468, %v1555
        %v1652 = vadd.f32 %v1539, %v1636
        %v1653 = vadd.f32 %v1540, %v1637
        %v1654 = vadd.f32 %v1541, %v1638
        %v1655 = vadd.f32 %v1542, %v1639
        %v1656 = vadd.f32 %v1543, %v1640
        %v1657 = vadd.f32 %v1544, %v1641
        %v1658 = vadd.f32 %v1545, %v1642
        %v1659 = vadd.f32 %v1546, %v1643
        %v1660 = vadd.f32 %v1547, %v1644
        %v1661 = vadd.f32 %v1548, %v1645
        %v1662 = vadd.f32 %v1549, %v1646
        %v1663 = vadd.f32 %v1550, %v1647
        %v1664 = vadd.f32 %v1551, %v1648
        %v1665 = vadd.f32 %v1552, %v1649
        %v1666 = vadd.f32 %v1553, %v1650
        %v1667 = vadd.f32 %v1554, %v1651
        %v1668 = vmax.f32 %v1652, 1e-15
        %v1669 = vmax.f32 %v1653, 1e-15
        %v1670 = vmax.f32 %v1654, 1e-15
        %v1671 = vmax.f32 %v1655, 1e-15
        %v1672 = vmax.f32 %v1656, 1e-15
        %v1673 = vmax.f32 %v1657, 1e-15
        %v1674 = vmax.f32 %v1658, 1e-15
        %v1675 = vmax.f32 %v1659, 1e-15
        %v1676 = vmax.f32 %v1660, 1e-15
        %v1677 = vmax.f32 %v1661, 1e-15
        %v1678 = vmax.f32 %v1662, 1e-15
        %v1679 = vmax.f32 %v1663, 1e-15
        %v1680 = vmax.f32 %v1664, 1e-15
        %v1681 = vmax.f32 %v1665, 1e-15
        %v1682 = vmax.f32 %v1666, 1e-15
        %v1683 = vmax.f32 %v1667, 1e-15
        %v1684 = vrcp.pop %v1668
        %v1685 = vrcp.pop %v1669
        %v1686 = vrcp.pop %v1670
        %v1687 = vrcp.pop %v1671
        %v1688 = vrcp.pop %v1672
        %v1689 = vrcp.pop %v1673
        %v1690 = vrcp.pop %v1674
        %v1691 = vrcp.pop %v1675
        %v1692 = vrcp.pop %v1676
        %v1693 = vrcp.pop %v1677
        %v1694 = vrcp.pop %v1678
        %v1695 = vrcp.pop %v1679
        %v1696 = vrcp.pop %v1680
        %v1697 = vrcp.pop %v1681
        %v1698 = vrcp.pop %v1682
        %v1699 = vrcp.pop %v1683
        %v1700 = vmul.f32 %v1620, %v1684
        %v1701 = vmul.f32 %v1621, %v1685
        %v1702 = vmul.f32 %v1622, %v1686
        %v1703 = vmul.f32 %v1623, %v1687
        %v1704 = vmul.f32 %v1624, %v1688
        %v1705 = vmul.f32 %v1625, %v1689
        %v1706 = vmul.f32 %v1626, %v1690
        %v1707 = vmul.f32 %v1627, %v1691
        %v1708 = vmul.f32 %v1628, %v1692
        %v1709 = vmul.f32 %v1629, %v1693
        %v1710 = vmul.f32 %v1630, %v1694
        %v1711 = vmul.f32 %v1631, %v1695
        %v1712 = vmul.f32 %v1632, %v1696
        %v1713 = vmul.f32 %v1633, %v1697
        %v1714 = vmul.f32 %v1634, %v1698
        %v1715 = vmul.f32 %v1635, %v1699
        %v1716 = vmul.f32 %v1700, %v1700
        %v1717 = vmul.f32 %v1701, %v1701
        %v1718 = vmul.f32 %v1702, %v1702
        %v1719 = vmul.f32 %v1703, %v1703
        %v1720 = vmul.f32 %v1704, %v1704
        %v1721 = vmul.f32 %v1705, %v1705
        %v1722 = vmul.f32 %v1706, %v1706
        %v1723 = vmul.f32 %v1707, %v1707
        %v1724 = vmul.f32 %v1708, %v1708
        %v1725 = vmul.f32 %v1709, %v1709
        %v1726 = vmul.f32 %v1710, %v1710
        %v1727 = vmul.f32 %v1711, %v1711
        %v1728 = vmul.f32 %v1712, %v1712
        %v1729 = vmul.f32 %v1713, %v1713
        %v1730 = vmul.f32 %v1714, %v1714
        %v1731 = vmul.f32 %v1715, %v1715
        %1732 = vadd.xlane.f32.xlu0 %v1716
        %v1733 = vpop.xlane.xlu0 %1732
        %1734 = vadd.xlane.f32.xlu0 %v1717
        %v1735 = vpop.xlane.xlu0 %1734
        %1736 = vadd.xlane.f32.xlu0 %v1718
        %v1737 = vpop.xlane.xlu0 %1736
        %1738 = vadd.xlane.f32.xlu0 %v1719
        %v1739 = vpop.xlane.xlu0 %1738
        %1740 = vadd.xlane.f32.xlu0 %v1720
        %v1741 = vpop.xlane.xlu0 %1740
        %1742 = vadd.xlane.f32.xlu0 %v1721
        %v1743 = vpop.xlane.xlu0 %1742
        %1744 = vadd.xlane.f32.xlu0 %v1722
        %v1745 = vpop.xlane.xlu0 %1744
        %1746 = vadd.xlane.f32.xlu0 %v1723
        %v1747 = vpop.xlane.xlu0 %1746
        %1748 = vadd.xlane.f32.xlu0 %v1724
        %v1749 = vpop.xlane.xlu0 %1748
        %1750 = vadd.xlane.f32.xlu0 %v1725
        %v1751 = vpop.xlane.xlu0 %1750
        %1752 = vadd.xlane.f32.xlu0 %v1726
        %v1753 = vpop.xlane.xlu0 %1752
        %1754 = vadd.xlane.f32.xlu0 %v1727
        %v1755 = vpop.xlane.xlu0 %1754
        %1756 = vadd.xlane.f32.xlu0 %v1728
        %v1757 = vpop.xlane.xlu0 %1756
        %1758 = vadd.xlane.f32.xlu0 %v1729
        %v1759 = vpop.xlane.xlu0 %1758
        %1760 = vadd.xlane.f32.xlu0 %v1730
        %v1761 = vpop.xlane.xlu0 %1760
        %1762 = vadd.xlane.f32.xlu0 %v1731
        %v1763 = vpop.xlane.xlu0 %1762
        %v1764 = vrsqrt.pop %v1733
        %v1765 = vmul.f32 %v1733, %v1764
        %vm1766 = vcmp.eq.f32.partialorder %v1733, inf
        %v1767 = vsel %vm1766, %v1733, %v1765
        %vm1768 = vcmp.eq.f32.partialorder %v1733, 0.0
        %v1769 = vand.u32 %v1733, 2147483648
        %v1770 = vsel %vm1768, %v1769, %v1767
        %v1771 = vrsqrt.pop %v1735
        %v1772 = vmul.f32 %v1735, %v1771
        %vm1773 = vcmp.eq.f32.partialorder %v1735, inf
        %v1774 = vsel %vm1773, %v1735, %v1772
        %vm1775 = vcmp.eq.f32.partialorder %v1735, 0.0
        %v1776 = vand.u32 %v1735, 2147483648
        %v1777 = vsel %vm1775, %v1776, %v1774
        %v1778 = vrsqrt.pop %v1737
        %v1779 = vmul.f32 %v1737, %v1778
        %vm1780 = vcmp.eq.f32.partialorder %v1737, inf
        %v1781 = vsel %vm1780, %v1737, %v1779
        %vm1782 = vcmp.eq.f32.partialorder %v1737, 0.0
        %v1783 = vand.u32 %v1737, 2147483648
        %v1784 = vsel %vm1782, %v1783, %v1781
        %v1785 = vrsqrt.pop %v1739
        %v1786 = vmul.f32 %v1739, %v1785
        %vm1787 = vcmp.eq.f32.partialorder %v1739, inf
        %v1788 = vsel %vm1787, %v1739, %v1786
        %vm1789 = vcmp.eq.f32.partialorder %v1739, 0.0
        %v1790 = vand.u32 %v1739, 2147483648
        %v1791 = vsel %vm1789, %v1790, %v1788
        %v1792 = vrsqrt.pop %v1741
        %v1793 = vmul.f32 %v1741, %v1792
        %vm1794 = vcmp.eq.f32.partialorder %v1741, inf
        %v1795 = vsel %vm1794, %v1741, %v1793
        %vm1796 = vcmp.eq.f32.partialorder %v1741, 0.0
        %v1797 = vand.u32 %v1741, 2147483648
        %v1798 = vsel %vm1796, %v1797, %v1795
        %v1799 = vrsqrt.pop %v1743
        %v1800 = vmul.f32 %v1743, %v1799
        %vm1801 = vcmp.eq.f32.partialorder %v1743, inf
        %v1802 = vsel %vm1801, %v1743, %v1800
        %vm1803 = vcmp.eq.f32.partialorder %v1743, 0.0
        %v1804 = vand.u32 %v1743, 2147483648
        %v1805 = vsel %vm1803, %v1804, %v1802
        %v1806 = vrsqrt.pop %v1745
        %v1807 = vmul.f32 %v1745, %v1806
        %vm1808 = vcmp.eq.f32.partialorder %v1745, inf
        %v1809 = vsel %vm1808, %v1745, %v1807
        %vm1810 = vcmp.eq.f32.partialorder %v1745, 0.0
        %v1811 = vand.u32 %v1745, 2147483648
        %v1812 = vsel %vm1810, %v1811, %v1809
        %v1813 = vrsqrt.pop %v1747
        %v1814 = vmul.f32 %v1747, %v1813
        %vm1815 = vcmp.eq.f32.partialorder %v1747, inf
        %v1816 = vsel %vm1815, %v1747, %v1814
        %vm1817 = vcmp.eq.f32.partialorder %v1747, 0.0
        %v1818 = vand.u32 %v1747, 2147483648
        %v1819 = vsel %vm1817, %v1818, %v1816
        %v1820 = vrsqrt.pop %v1749
        %v1821 = vmul.f32 %v1749, %v1820
        %vm1822 = vcmp.eq.f32.partialorder %v1749, inf
        %v1823 = vsel %vm1822, %v1749, %v1821
        %vm1824 = vcmp.eq.f32.partialorder %v1749, 0.0
        %v1825 = vand.u32 %v1749, 2147483648
        %v1826 = vsel %vm1824, %v1825, %v1823
        %v1827 = vrsqrt.pop %v1751
        %v1828 = vmul.f32 %v1751, %v1827
        %vm1829 = vcmp.eq.f32.partialorder %v1751, inf
        %v1830 = vsel %vm1829, %v1751, %v1828
        %vm1831 = vcmp.eq.f32.partialorder %v1751, 0.0
        %v1832 = vand.u32 %v1751, 2147483648
        %v1833 = vsel %vm1831, %v1832, %v1830
        %v1834 = vrsqrt.pop %v1753
        %v1835 = vmul.f32 %v1753, %v1834
        %vm1836 = vcmp.eq.f32.partialorder %v1753, inf
        %v1837 = vsel %vm1836, %v1753, %v1835
        %vm1838 = vcmp.eq.f32.partialorder %v1753, 0.0
        %v1839 = vand.u32 %v1753, 2147483648
        %v1840 = vsel %vm1838, %v1839, %v1837
        %v1841 = vrsqrt.pop %v1755
        %v1842 = vmul.f32 %v1755, %v1841
        %vm1843 = vcmp.eq.f32.partialorder %v1755, inf
        %v1844 = vsel %vm1843, %v1755, %v1842
        %vm1845 = vcmp.eq.f32.partialorder %v1755, 0.0
        %v1846 = vand.u32 %v1755, 2147483648
        %v1847 = vsel %vm1845, %v1846, %v1844
        %v1848 = vrsqrt.pop %v1757
        %v1849 = vmul.f32 %v1757, %v1848
        %vm1850 = vcmp.eq.f32.partialorder %v1757, inf
        %v1851 = vsel %vm1850, %v1757, %v1849
        %vm1852 = vcmp.eq.f32.partialorder %v1757, 0.0
        %v1853 = vand.u32 %v1757, 2147483648
        %v1854 = vsel %vm1852, %v1853, %v1851
        %v1855 = vrsqrt.pop %v1759
        %v1856 = vmul.f32 %v1759, %v1855
        %vm1857 = vcmp.eq.f32.partialorder %v1759, inf
        %v1858 = vsel %vm1857, %v1759, %v1856
        %vm1859 = vcmp.eq.f32.partialorder %v1759, 0.0
        %v1860 = vand.u32 %v1759, 2147483648
        %v1861 = vsel %vm1859, %v1860, %v1858
        %v1862 = vrsqrt.pop %v1761
        %v1863 = vmul.f32 %v1761, %v1862
        %vm1864 = vcmp.eq.f32.partialorder %v1761, inf
        %v1865 = vsel %vm1864, %v1761, %v1863
        %vm1866 = vcmp.eq.f32.partialorder %v1761, 0.0
        %v1867 = vand.u32 %v1761, 2147483648
        %v1868 = vsel %vm1866, %v1867, %v1865
        %v1869 = vrsqrt.pop %v1763
        %v1870 = vmul.f32 %v1763, %v1869
        %vm1871 = vcmp.eq.f32.partialorder %v1763, inf
        %v1872 = vsel %vm1871, %v1763, %v1870
        %vm1873 = vcmp.eq.f32.partialorder %v1763, 0.0
        %v1874 = vand.u32 %v1763, 2147483648
        %v1875 = vsel %vm1873, %v1874, %v1872
        %v1876 = vmax.f32 %v1770, 1e-15
        %v1877 = vmax.f32 %v1777, 1e-15
        %v1878 = vmax.f32 %v1784, 1e-15
        %v1879 = vmax.f32 %v1791, 1e-15
        %v1880 = vmax.f32 %v1798, 1e-15
        %v1881 = vmax.f32 %v1805, 1e-15
        %v1882 = vmax.f32 %v1812, 1e-15
        %v1883 = vmax.f32 %v1819, 1e-15
        %v1884 = vmax.f32 %v1826, 1e-15
        %v1885 = vmax.f32 %v1833, 1e-15
        %v1886 = vmax.f32 %v1840, 1e-15
        %v1887 = vmax.f32 %v1847, 1e-15
        %v1888 = vmax.f32 %v1854, 1e-15
        %v1889 = vmax.f32 %v1861, 1e-15
        %v1890 = vmax.f32 %v1868, 1e-15
        %v1891 = vmax.f32 %v1875, 1e-15
        %vm1892 = vcmp.gt.f32.partialorder %v1876, 0.996
        %vm1893 = vcmp.gt.f32.partialorder %v1877, 0.996
        %vm1894 = vcmp.gt.f32.partialorder %v1878, 0.996
        %vm1895 = vcmp.gt.f32.partialorder %v1879, 0.996
        %vm1896 = vcmp.gt.f32.partialorder %v1880, 0.996
        %vm1897 = vcmp.gt.f32.partialorder %v1881, 0.996
        %vm1898 = vcmp.gt.f32.partialorder %v1882, 0.996
        %vm1899 = vcmp.gt.f32.partialorder %v1883, 0.996
        %vm1900 = vcmp.gt.f32.partialorder %v1884, 0.996
        %vm1901 = vcmp.gt.f32.partialorder %v1885, 0.996
        %vm1902 = vcmp.gt.f32.partialorder %v1886, 0.996
        %vm1903 = vcmp.gt.f32.partialorder %v1887, 0.996
        %vm1904 = vcmp.gt.f32.partialorder %v1888, 0.996
        %vm1905 = vcmp.gt.f32.partialorder %v1889, 0.996
        %vm1906 = vcmp.gt.f32.partialorder %v1890, 0.996
        %vm1907 = vcmp.gt.f32.partialorder %v1891, 0.996
        %v1908 = vrcp.pop %v1876
        %v1909 = vrcp.pop %v1877
        %v1910 = vrcp.pop %v1878
        %v1911 = vrcp.pop %v1879
        %v1912 = vrcp.pop %v1880
        %v1913 = vrcp.pop %v1881
        %v1914 = vrcp.pop %v1882
        %v1915 = vrcp.pop %v1883
        %v1916 = vrcp.pop %v1884
        %v1917 = vrcp.pop %v1885
        %v1918 = vrcp.pop %v1886
        %v1919 = vrcp.pop %v1887
        %v1920 = vrcp.pop %v1888
        %v1921 = vrcp.pop %v1889
        %v1922 = vrcp.pop %v1890
        %v1923 = vrcp.pop %v1891
        %v1924 = vmul.f32 %v1908, 0.996
        %v1925 = vmul.f32 %v1909, 0.996
        %v1926 = vmul.f32 %v1910, 0.996
        %v1927 = vmul.f32 %v1911, 0.996
        %v1928 = vmul.f32 %v1912, 0.996
        %v1929 = vmul.f32 %v1913, 0.996
        %v1930 = vmul.f32 %v1914, 0.996
        %v1931 = vmul.f32 %v1915, 0.996
        %v1932 = vmul.f32 %v1916, 0.996
        %v1933 = vmul.f32 %v1917, 0.996
        %v1934 = vmul.f32 %v1918, 0.996
        %v1935 = vmul.f32 %v1919, 0.996
        %v1936 = vmul.f32 %v1920, 0.996
        %v1937 = vmul.f32 %v1921, 0.996
        %v1938 = vmul.f32 %v1922, 0.996
        %v1939 = vmul.f32 %v1923, 0.996
        %v1940 = vsel %vm1892, %v1924, 1.0
        %v1941 = vsel %vm1893, %v1925, 1.0
        %v1942 = vsel %vm1894, %v1926, 1.0
        %v1943 = vsel %vm1895, %v1927, 1.0
        %v1944 = vsel %vm1896, %v1928, 1.0
        %v1945 = vsel %vm1897, %v1929, 1.0
        %v1946 = vsel %vm1898, %v1930, 1.0
        %v1947 = vsel %vm1899, %v1931, 1.0
        %v1948 = vsel %vm1900, %v1932, 1.0
        %v1949 = vsel %vm1901, %v1933, 1.0
        %v1950 = vsel %vm1902, %v1934, 1.0
        %v1951 = vsel %vm1903, %v1935, 1.0
        %v1952 = vsel %vm1904, %v1936, 1.0
        %v1953 = vsel %vm1905, %v1937, 1.0
        %v1954 = vsel %vm1906, %v1938, 1.0
        %v1955 = vsel %vm1907, %v1939, 1.0
        %v1956 = vmul.f32 %v1700, %v1940
        %v1957 = vmul.f32 %v1701, %v1941
        %v1958 = vmul.f32 %v1702, %v1942
        %v1959 = vmul.f32 %v1703, %v1943
        %v1960 = vmul.f32 %v1704, %v1944
        %v1961 = vmul.f32 %v1705, %v1945
        %v1962 = vmul.f32 %v1706, %v1946
        %v1963 = vmul.f32 %v1707, %v1947
        %v1964 = vmul.f32 %v1708, %v1948
        %v1965 = vmul.f32 %v1709, %v1949
        %v1966 = vmul.f32 %v1710, %v1950
        %v1967 = vmul.f32 %v1711, %v1951
        %v1968 = vmul.f32 %v1712, %v1952
        %v1969 = vmul.f32 %v1713, %v1953
        %v1970 = vmul.f32 %v1714, %v1954
        %v1971 = vmul.f32 %v1715, %v1955
        %v1972 = vsel %vm1892, 0.996, %v1876
        %v1973 = vsel %vm1893, 0.996, %v1877
        %v1974 = vsel %vm1894, 0.996, %v1878
        %v1975 = vsel %vm1895, 0.996, %v1879
        %v1976 = vsel %vm1896, 0.996, %v1880
        %v1977 = vsel %vm1897, 0.996, %v1881
        %v1978 = vsel %vm1898, 0.996, %v1882
        %v1979 = vsel %vm1899, 0.996, %v1883
        %v1980 = vsel %vm1900, 0.996, %v1884
        %v1981 = vsel %vm1901, 0.996, %v1885
        %v1982 = vsel %vm1902, 0.996, %v1886
        %v1983 = vsel %vm1903, 0.996, %v1887
        %v1984 = vsel %vm1904, 0.996, %v1888
        %v1985 = vsel %vm1905, 0.996, %v1889
        %v1986 = vsel %vm1906, 0.996, %v1890
        %v1987 = vsel %vm1907, 0.996, %v1891
        %v1988 = vmax.f32 %v1972, -1.0
        %v1989 = vmax.f32 %v1973, -1.0
        %v1990 = vmax.f32 %v1974, -1.0
        %v1991 = vmax.f32 %v1975, -1.0
        %v1992 = vmax.f32 %v1976, -1.0
        %v1993 = vmax.f32 %v1977, -1.0
        %v1994 = vmax.f32 %v1978, -1.0
        %v1995 = vmax.f32 %v1979, -1.0
        %v1996 = vmax.f32 %v1980, -1.0
        %v1997 = vmax.f32 %v1981, -1.0
        %v1998 = vmax.f32 %v1982, -1.0
        %v1999 = vmax.f32 %v1983, -1.0
        %v2000 = vmax.f32 %v1984, -1.0
        %v2001 = vmax.f32 %v1985, -1.0
        %v2002 = vmax.f32 %v1986, -1.0
        %v2003 = vmax.f32 %v1987, -1.0
        %v2004 = vmin.f32 %v1988, 1.0
        %v2005 = vmin.f32 %v1989, 1.0
        %v2006 = vmin.f32 %v1990, 1.0
        %v2007 = vmin.f32 %v1991, 1.0
        %v2008 = vmin.f32 %v1992, 1.0
        %v2009 = vmin.f32 %v1993, 1.0
        %v2010 = vmin.f32 %v1994, 1.0
        %v2011 = vmin.f32 %v1995, 1.0
        %v2012 = vmin.f32 %v1996, 1.0
        %v2013 = vmin.f32 %v1997, 1.0
        %v2014 = vmin.f32 %v1998, 1.0
        %v2015 = vmin.f32 %v1999, 1.0
        %v2016 = vmin.f32 %v2000, 1.0
        %v2017 = vmin.f32 %v2001, 1.0
        %v2018 = vmin.f32 %v2002, 1.0
        %v2019 = vmin.f32 %v2003, 1.0
        %v2020 = vadd.f32 %v2004, 1.0
        %v2021 = vlog2.pop %v2020
        %v2022 = vmul.f32 %v2021, 0.6931472
        %v2023 = vmul.f32 -0.5, %v2004
        %v2024 = vadd.f32 %v2023, 1.0
        %v2025 = vmul.f32 %v2024, %v2004
        %v2026 = vand.u32 2147483647, %v2004
        %vm2027 = vcmp.lt.f32.partialorder %v2026, 0.0004427343
        %v2028 = vsel %vm2027, %v2025, %v2022
        %v2029 = vadd.f32 %v2005, 1.0
        %v2030 = vlog2.pop %v2029
        %v2031 = vmul.f32 %v2030, 0.6931472
        %v2032 = vmul.f32 -0.5, %v2005
        %v2033 = vadd.f32 %v2032, 1.0
        %v2034 = vmul.f32 %v2033, %v2005
        %v2035 = vand.u32 2147483647, %v2005
        %vm2036 = vcmp.lt.f32.partialorder %v2035, 0.0004427343
        %v2037 = vsel %vm2036, %v2034, %v2031
        %v2038 = vadd.f32 %v2006, 1.0
        %v2039 = vlog2.pop %v2038
        %v2040 = vmul.f32 %v2039, 0.6931472
        %v2041 = vmul.f32 -0.5, %v2006
        %v2042 = vadd.f32 %v2041, 1.0
        %v2043 = vmul.f32 %v2042, %v2006
        %v2044 = vand.u32 2147483647, %v2006
        %vm2045 = vcmp.lt.f32.partialorder %v2044, 0.0004427343
        %v2046 = vsel %vm2045, %v2043, %v2040
        %v2047 = vadd.f32 %v2007, 1.0
        %v2048 = vlog2.pop %v2047
        %v2049 = vmul.f32 %v2048, 0.6931472
        %v2050 = vmul.f32 -0.5, %v2007
        %v2051 = vadd.f32 %v2050, 1.0
        %v2052 = vmul.f32 %v2051, %v2007
        %v2053 = vand.u32 2147483647, %v2007
        %vm2054 = vcmp.lt.f32.partialorder %v2053, 0.0004427343
        %v2055 = vsel %vm2054, %v2052, %v2049
        %v2056 = vadd.f32 %v2008, 1.0
        %v2057 = vlog2.pop %v2056
        %v2058 = vmul.f32 %v2057, 0.6931472
        %v2059 = vmul.f32 -0.5, %v2008
        %v2060 = vadd.f32 %v2059, 1.0
        %v2061 = vmul.f32 %v2060, %v2008
        %v2062 = vand.u32 2147483647, %v2008
        %vm2063 = vcmp.lt.f32.partialorder %v2062, 0.0004427343
        %v2064 = vsel %vm2063, %v2061, %v2058
        %v2065 = vadd.f32 %v2009, 1.0
        %v2066 = vlog2.pop %v2065
        %v2067 = vmul.f32 %v2066, 0.6931472
        %v2068 = vmul.f32 -0.5, %v2009
        %v2069 = vadd.f32 %v2068, 1.0
        %v2070 = vmul.f32 %v2069, %v2009
        %v2071 = vand.u32 2147483647, %v2009
        %vm2072 = vcmp.lt.f32.partialorder %v2071, 0.0004427343
        %v2073 = vsel %vm2072, %v2070, %v2067
        %v2074 = vadd.f32 %v2010, 1.0
        %v2075 = vlog2.pop %v2074
        %v2076 = vmul.f32 %v2075, 0.6931472
        %v2077 = vmul.f32 -0.5, %v2010
        %v2078 = vadd.f32 %v2077, 1.0
        %v2079 = vmul.f32 %v2078, %v2010
        %v2080 = vand.u32 2147483647, %v2010
        %vm2081 = vcmp.lt.f32.partialorder %v2080, 0.0004427343
        %v2082 = vsel %vm2081, %v2079, %v2076
        %v2083 = vadd.f32 %v2011, 1.0
        %v2084 = vlog2.pop %v2083
        %v2085 = vmul.f32 %v2084, 0.6931472
        %v2086 = vmul.f32 -0.5, %v2011
        %v2087 = vadd.f32 %v2086, 1.0
        %v2088 = vmul.f32 %v2087, %v2011
        %v2089 = vand.u32 2147483647, %v2011
        %vm2090 = vcmp.lt.f32.partialorder %v2089, 0.0004427343
        %v2091 = vsel %vm2090, %v2088, %v2085
        %v2092 = vadd.f32 %v2012, 1.0
        %v2093 = vlog2.pop %v2092
        %v2094 = vmul.f32 %v2093, 0.6931472
        %v2095 = vmul.f32 -0.5, %v2012
        %v2096 = vadd.f32 %v2095, 1.0
        %v2097 = vmul.f32 %v2096, %v2012
        %v2098 = vand.u32 2147483647, %v2012
        %vm2099 = vcmp.lt.f32.partialorder %v2098, 0.0004427343
        %v2100 = vsel %vm2099, %v2097, %v2094
        %v2101 = vadd.f32 %v2013, 1.0
        %v2102 = vlog2.pop %v2101
        %v2103 = vmul.f32 %v2102, 0.6931472
        %v2104 = vmul.f32 -0.5, %v2013
        %v2105 = vadd.f32 %v2104, 1.0
        %v2106 = vmul.f32 %v2105, %v2013
        %v2107 = vand.u32 2147483647, %v2013
        %vm2108 = vcmp.lt.f32.partialorder %v2107, 0.0004427343
        %v2109 = vsel %vm2108, %v2106, %v2103
        %v2110 = vadd.f32 %v2014, 1.0
        %v2111 = vlog2.pop %v2110
        %v2112 = vmul.f32 %v2111, 0.6931472
        %v2113 = vmul.f32 -0.5, %v2014
        %v2114 = vadd.f32 %v2113, 1.0
        %v2115 = vmul.f32 %v2114, %v2014
        %v2116 = vand.u32 2147483647, %v2014
        %vm2117 = vcmp.lt.f32.partialorder %v2116, 0.0004427343
        %v2118 = vsel %vm2117, %v2115, %v2112
        %v2119 = vadd.f32 %v2015, 1.0
        %v2120 = vlog2.pop %v2119
        %v2121 = vmul.f32 %v2120, 0.6931472
        %v2122 = vmul.f32 -0.5, %v2015
        %v2123 = vadd.f32 %v2122, 1.0
        %v2124 = vmul.f32 %v2123, %v2015
        %v2125 = vand.u32 2147483647, %v2015
        %vm2126 = vcmp.lt.f32.partialorder %v2125, 0.0004427343
        %v2127 = vsel %vm2126, %v2124, %v2121
        %v2128 = vadd.f32 %v2016, 1.0
        %v2129 = vlog2.pop %v2128
        %v2130 = vmul.f32 %v2129, 0.6931472
        %v2131 = vmul.f32 -0.5, %v2016
        %v2132 = vadd.f32 %v2131, 1.0
        %v2133 = vmul.f32 %v2132, %v2016
        %v2134 = vand.u32 2147483647, %v2016
        %vm2135 = vcmp.lt.f32.partialorder %v2134, 0.0004427343
        %v2136 = vsel %vm2135, %v2133, %v2130
        %v2137 = vadd.f32 %v2017, 1.0
        %v2138 = vlog2.pop %v2137
        %v2139 = vmul.f32 %v2138, 0.6931472
        %v2140 = vmul.f32 -0.5, %v2017
        %v2141 = vadd.f32 %v2140, 1.0
        %v2142 = vmul.f32 %v2141, %v2017
        %v2143 = vand.u32 2147483647, %v2017
        %vm2144 = vcmp.lt.f32.partialorder %v2143, 0.0004427343
        %v2145 = vsel %vm2144, %v2142, %v2139
        %v2146 = vadd.f32 %v2018, 1.0
        %v2147 = vlog2.pop %v2146
        %v2148 = vmul.f32 %v2147, 0.6931472
        %v2149 = vmul.f32 -0.5, %v2018
        %v2150 = vadd.f32 %v2149, 1.0
        %v2151 = vmul.f32 %v2150, %v2018
        %v2152 = vand.u32 2147483647, %v2018
        %vm2153 = vcmp.lt.f32.partialorder %v2152, 0.0004427343
        %v2154 = vsel %vm2153, %v2151, %v2148
        %v2155 = vadd.f32 %v2019, 1.0
        %v2156 = vlog2.pop %v2155
        %v2157 = vmul.f32 %v2156, 0.6931472
        %v2158 = vmul.f32 -0.5, %v2019
        %v2159 = vadd.f32 %v2158, 1.0
        %v2160 = vmul.f32 %v2159, %v2019
        %v2161 = vand.u32 2147483647, %v2019
        %vm2162 = vcmp.lt.f32.partialorder %v2161, 0.0004427343
        %v2163 = vsel %vm2162, %v2160, %v2157
        %v2164 = vsub.f32 0.0, %v2004
        %v2165 = vsub.f32 0.0, %v2005
        %v2166 = vsub.f32 0.0, %v2006
        %v2167 = vsub.f32 0.0, %v2007
        %v2168 = vsub.f32 0.0, %v2008
        %v2169 = vsub.f32 0.0, %v2009
        %v2170 = vsub.f32 0.0, %v2010
        %v2171 = vsub.f32 0.0, %v2011
        %v2172 = vsub.f32 0.0, %v2012
        %v2173 = vsub.f32 0.0, %v2013
        %v2174 = vsub.f32 0.0, %v2014
        %v2175 = vsub.f32 0.0, %v2015
        %v2176 = vsub.f32 0.0, %v2016
        %v2177 = vsub.f32 0.0, %v2017
        %v2178 = vsub.f32 0.0, %v2018
        %v2179 = vsub.f32 0.0, %v2019
        %v2180 = vadd.f32 %v2164, 1.0
        %v2181 = vlog2.pop %v2180
        %v2182 = vmul.f32 %v2181, 0.6931472
        %v2183 = vmul.f32 -0.5, %v2164
        %v2184 = vadd.f32 %v2183, 1.0
        %v2185 = vmul.f32 %v2184, %v2164
        %v2186 = vand.u32 2147483647, %v2164
        %vm2187 = vcmp.lt.f32.partialorder %v2186, 0.0004427343
        %v2188 = vsel %vm2187, %v2185, %v2182
        %v2189 = vadd.f32 %v2165, 1.0
        %v2190 = vlog2.pop %v2189
        %v2191 = vmul.f32 %v2190, 0.6931472
        %v2192 = vmul.f32 -0.5, %v2165
        %v2193 = vadd.f32 %v2192, 1.0
        %v2194 = vmul.f32 %v2193, %v2165
        %v2195 = vand.u32 2147483647, %v2165
        %vm2196 = vcmp.lt.f32.partialorder %v2195, 0.0004427343
        %v2197 = vsel %vm2196, %v2194, %v2191
        %v2198 = vadd.f32 %v2166, 1.0
        %v2199 = vlog2.pop %v2198
        %v2200 = vmul.f32 %v2199, 0.6931472
        %v2201 = vmul.f32 -0.5, %v2166
        %v2202 = vadd.f32 %v2201, 1.0
        %v2203 = vmul.f32 %v2202, %v2166
        %v2204 = vand.u32 2147483647, %v2166
        %vm2205 = vcmp.lt.f32.partialorder %v2204, 0.0004427343
        %v2206 = vsel %vm2205, %v2203, %v2200
        %v2207 = vadd.f32 %v2167, 1.0
        %v2208 = vlog2.pop %v2207
        %v2209 = vmul.f32 %v2208, 0.6931472
        %v2210 = vmul.f32 -0.5, %v2167
        %v2211 = vadd.f32 %v2210, 1.0
        %v2212 = vmul.f32 %v2211, %v2167
        %v2213 = vand.u32 2147483647, %v2167
        %vm2214 = vcmp.lt.f32.partialorder %v2213, 0.0004427343
        %v2215 = vsel %vm2214, %v2212, %v2209
        %v2216 = vadd.f32 %v2168, 1.0
        %v2217 = vlog2.pop %v2216
        %v2218 = vmul.f32 %v2217, 0.6931472
        %v2219 = vmul.f32 -0.5, %v2168
        %v2220 = vadd.f32 %v2219, 1.0
        %v2221 = vmul.f32 %v2220, %v2168
        %v2222 = vand.u32 2147483647, %v2168
        %vm2223 = vcmp.lt.f32.partialorder %v2222, 0.0004427343
        %v2224 = vsel %vm2223, %v2221, %v2218
        %v2225 = vadd.f32 %v2169, 1.0
        %v2226 = vlog2.pop %v2225
        %v2227 = vmul.f32 %v2226, 0.6931472
        %v2228 = vmul.f32 -0.5, %v2169
        %v2229 = vadd.f32 %v2228, 1.0
        %v2230 = vmul.f32 %v2229, %v2169
        %v2231 = vand.u32 2147483647, %v2169
        %vm2232 = vcmp.lt.f32.partialorder %v2231, 0.0004427343
        %v2233 = vsel %vm2232, %v2230, %v2227
        %v2234 = vadd.f32 %v2170, 1.0
        %v2235 = vlog2.pop %v2234
        %v2236 = vmul.f32 %v2235, 0.6931472
        %v2237 = vmul.f32 -0.5, %v2170
        %v2238 = vadd.f32 %v2237, 1.0
        %v2239 = vmul.f32 %v2238, %v2170
        %v2240 = vand.u32 2147483647, %v2170
        %vm2241 = vcmp.lt.f32.partialorder %v2240, 0.0004427343
        %v2242 = vsel %vm2241, %v2239, %v2236
        %v2243 = vadd.f32 %v2171, 1.0
        %v2244 = vlog2.pop %v2243
        %v2245 = vmul.f32 %v2244, 0.6931472
        %v2246 = vmul.f32 -0.5, %v2171
        %v2247 = vadd.f32 %v2246, 1.0
        %v2248 = vmul.f32 %v2247, %v2171
        %v2249 = vand.u32 2147483647, %v2171
        %vm2250 = vcmp.lt.f32.partialorder %v2249, 0.0004427343
        %v2251 = vsel %vm2250, %v2248, %v2245
        %v2252 = vadd.f32 %v2172, 1.0
        %v2253 = vlog2.pop %v2252
        %v2254 = vmul.f32 %v2253, 0.6931472
        %v2255 = vmul.f32 -0.5, %v2172
        %v2256 = vadd.f32 %v2255, 1.0
        %v2257 = vmul.f32 %v2256, %v2172
        %v2258 = vand.u32 2147483647, %v2172
        %vm2259 = vcmp.lt.f32.partialorder %v2258, 0.0004427343
        %v2260 = vsel %vm2259, %v2257, %v2254
        %v2261 = vadd.f32 %v2173, 1.0
        %v2262 = vlog2.pop %v2261
        %v2263 = vmul.f32 %v2262, 0.6931472
        %v2264 = vmul.f32 -0.5, %v2173
        %v2265 = vadd.f32 %v2264, 1.0
        %v2266 = vmul.f32 %v2265, %v2173
        %v2267 = vand.u32 2147483647, %v2173
        %vm2268 = vcmp.lt.f32.partialorder %v2267, 0.0004427343
        %v2269 = vsel %vm2268, %v2266, %v2263
        %v2270 = vadd.f32 %v2174, 1.0
        %v2271 = vlog2.pop %v2270
        %v2272 = vmul.f32 %v2271, 0.6931472
        %v2273 = vmul.f32 -0.5, %v2174
        %v2274 = vadd.f32 %v2273, 1.0
        %v2275 = vmul.f32 %v2274, %v2174
        %v2276 = vand.u32 2147483647, %v2174
        %vm2277 = vcmp.lt.f32.partialorder %v2276, 0.0004427343
        %v2278 = vsel %vm2277, %v2275, %v2272
        %v2279 = vadd.f32 %v2175, 1.0
        %v2280 = vlog2.pop %v2279
        %v2281 = vmul.f32 %v2280, 0.6931472
        %v2282 = vmul.f32 -0.5, %v2175
        %v2283 = vadd.f32 %v2282, 1.0
        %v2284 = vmul.f32 %v2283, %v2175
        %v2285 = vand.u32 2147483647, %v2175
        %vm2286 = vcmp.lt.f32.partialorder %v2285, 0.0004427343
        %v2287 = vsel %vm2286, %v2284, %v2281
        %v2288 = vadd.f32 %v2176, 1.0
        %v2289 = vlog2.pop %v2288
        %v2290 = vmul.f32 %v2289, 0.6931472
        %v2291 = vmul.f32 -0.5, %v2176
        %v2292 = vadd.f32 %v2291, 1.0
        %v2293 = vmul.f32 %v2292, %v2176
        %v2294 = vand.u32 2147483647, %v2176
        %vm2295 = vcmp.lt.f32.partialorder %v2294, 0.0004427343
        %v2296 = vsel %vm2295, %v2293, %v2290
        %v2297 = vadd.f32 %v2177, 1.0
        %v2298 = vlog2.pop %v2297
        %v2299 = vmul.f32 %v2298, 0.6931472
        %v2300 = vmul.f32 -0.5, %v2177
        %v2301 = vadd.f32 %v2300, 1.0
        %v2302 = vmul.f32 %v2301, %v2177
        %v2303 = vand.u32 2147483647, %v2177
        %vm2304 = vcmp.lt.f32.partialorder %v2303, 0.0004427343
        %v2305 = vsel %vm2304, %v2302, %v2299
        %v2306 = vadd.f32 %v2178, 1.0
        %v2307 = vlog2.pop %v2306
        %v2308 = vmul.f32 %v2307, 0.6931472
        %v2309 = vmul.f32 -0.5, %v2178
        %v2310 = vadd.f32 %v2309, 1.0
        %v2311 = vmul.f32 %v2310, %v2178
        %v2312 = vand.u32 2147483647, %v2178
        %vm2313 = vcmp.lt.f32.partialorder %v2312, 0.0004427343
        %v2314 = vsel %vm2313, %v2311, %v2308
        %v2315 = vadd.f32 %v2179, 1.0
        %v2316 = vlog2.pop %v2315
        %v2317 = vmul.f32 %v2316, 0.6931472
        %v2318 = vmul.f32 -0.5, %v2179
        %v2319 = vadd.f32 %v2318, 1.0
        %v2320 = vmul.f32 %v2319, %v2179
        %v2321 = vand.u32 2147483647, %v2179
        %vm2322 = vcmp.lt.f32.partialorder %v2321, 0.0004427343
        %v2323 = vsel %vm2322, %v2320, %v2317
        %v2324 = vsub.f32 %v2028, %v2188
        %v2325 = vsub.f32 %v2037, %v2197
        %v2326 = vsub.f32 %v2046, %v2206
        %v2327 = vsub.f32 %v2055, %v2215
        %v2328 = vsub.f32 %v2064, %v2224
        %v2329 = vsub.f32 %v2073, %v2233
        %v2330 = vsub.f32 %v2082, %v2242
        %v2331 = vsub.f32 %v2091, %v2251
        %v2332 = vsub.f32 %v2100, %v2260
        %v2333 = vsub.f32 %v2109, %v2269
        %v2334 = vsub.f32 %v2118, %v2278
        %v2335 = vsub.f32 %v2127, %v2287
        %v2336 = vsub.f32 %v2136, %v2296
        %v2337 = vsub.f32 %v2145, %v2305
        %v2338 = vsub.f32 %v2154, %v2314
        %v2339 = vsub.f32 %v2163, %v2323
        %v2340 = vmul.f32 %v2324, 0.5
        %v2341 = vmul.f32 %v2325, 0.5
        %v2342 = vmul.f32 %v2326, 0.5
        %v2343 = vmul.f32 %v2327, 0.5
        %v2344 = vmul.f32 %v2328, 0.5
        %v2345 = vmul.f32 %v2329, 0.5
        %v2346 = vmul.f32 %v2330, 0.5
        %v2347 = vmul.f32 %v2331, 0.5
        %v2348 = vmul.f32 %v2332, 0.5
        %v2349 = vmul.f32 %v2333, 0.5
        %v2350 = vmul.f32 %v2334, 0.5
        %v2351 = vmul.f32 %v2335, 0.5
        %v2352 = vmul.f32 %v2336, 0.5
        %v2353 = vmul.f32 %v2337, 0.5
        %v2354 = vmul.f32 %v2338, 0.5
        %v2355 = vmul.f32 %v2339, 0.5
        %v2356 = vrcp.pop %v1972
        %v2357 = vrcp.pop %v1973
        %v2358 = vrcp.pop %v1974
        %v2359 = vrcp.pop %v1975
        %v2360 = vrcp.pop %v1976
        %v2361 = vrcp.pop %v1977
        %v2362 = vrcp.pop %v1978
        %v2363 = vrcp.pop %v1979
        %v2364 = vrcp.pop %v1980
        %v2365 = vrcp.pop %v1981
        %v2366 = vrcp.pop %v1982
        %v2367 = vrcp.pop %v1983
        %v2368 = vrcp.pop %v1984
        %v2369 = vrcp.pop %v1985
        %v2370 = vrcp.pop %v1986
        %v2371 = vrcp.pop %v1987
        %v2372 = vmul.f32 %v2340, %v2356
        %v2373 = vmul.f32 %v2341, %v2357
        %v2374 = vmul.f32 %v2342, %v2358
        %v2375 = vmul.f32 %v2343, %v2359
        %v2376 = vmul.f32 %v2344, %v2360
        %v2377 = vmul.f32 %v2345, %v2361
        %v2378 = vmul.f32 %v2346, %v2362
        %v2379 = vmul.f32 %v2347, %v2363
        %v2380 = vmul.f32 %v2348, %v2364
        %v2381 = vmul.f32 %v2349, %v2365
        %v2382 = vmul.f32 %v2350, %v2366
        %v2383 = vmul.f32 %v2351, %v2367
        %v2384 = vmul.f32 %v2352, %v2368
        %v2385 = vmul.f32 %v2353, %v2369
        %v2386 = vmul.f32 %v2354, %v2370
        %v2387 = vmul.f32 %v2355, %v2371
        %v2388 = vmul.f32 %v2372, %v1956
        %v2389 = vmul.f32 %v2373, %v1957
        %v2390 = vmul.f32 %v2374, %v1958
        %v2391 = vmul.f32 %v2375, %v1959
        %v2392 = vmul.f32 %v2376, %v1960
        %v2393 = vmul.f32 %v2377, %v1961
        %v2394 = vmul.f32 %v2378, %v1962
        %v2395 = vmul.f32 %v2379, %v1963
        %v2396 = vmul.f32 %v2380, %v1964
        %v2397 = vmul.f32 %v2381, %v1965
        %v2398 = vmul.f32 %v2382, %v1966
        %v2399 = vmul.f32 %v2383, %v1967
        %v2400 = vmul.f32 %v2384, %v1968
        %v2401 = vmul.f32 %v2385, %v1969
        %v2402 = vmul.f32 %v2386, %v1970
        %v2403 = vmul.f32 %v2387, %v1971
        %2404 = vst [vmem:[%s231] sm:$0xff] %v2388
        %2405 = vst [vmem:[%s231 + $0x8] sm:$0xff] %v2389
        %2406 = vst [vmem:[%s231 + $0x10] sm:$0xff] %v2390
        %2407 = vst [vmem:[%s231 + $0x18] sm:$0xff] %v2391
        %2408 = vst [vmem:[%s231 + $0x20] sm:$0xff] %v2392
        %2409 = vst [vmem:[%s231 + $0x28] sm:$0xff] %v2393
        %2410 = vst [vmem:[%s231 + $0x30] sm:$0xff] %v2394
        %2411 = vst [vmem:[%s231 + $0x38] sm:$0xff] %v2395
        %2412 = vst [vmem:[%s231 + $0x40] sm:$0xff] %v2396
        %2413 = vst [vmem:[%s231 + $0x48] sm:$0xff] %v2397
        %2414 = vst [vmem:[%s231 + $0x50] sm:$0xff] %v2398
        %2415 = vst [vmem:[%s231 + $0x58] sm:$0xff] %v2399
        %2416 = vst [vmem:[%s231 + $0x60] sm:$0xff] %v2400
        %2417 = vst [vmem:[%s231 + $0x68] sm:$0xff] %v2401
        %2418 = vst [vmem:[%s231 + $0x70] sm:$0xff] %v2402
        %2419 = vst [vmem:[%s231 + $0x78] sm:$0xff] %v2403
        %s2420 = sand.u32 %s120, 1
        %s2421 = scalar_lea.sflag [#allocation5], %s2420
        %s2422 = sand.u32 %s120, 1
        %s2423 = smul.addr %s2422, 128
        %s2424 = scalar_lea.vmem [#allocation8], %s2423
        // Predicated region
        $region45: #{tpu_custom_call.1} parent=35 // pred_check
          %p2425 = pneg %p130
        $region46: #{tpu_custom_call.1} parent=35 // pred_check_branch
          %2427 = sbr.rel (%p2425) target = $region48
        $region47: #{tpu_custom_call.1} parent=35 // pred_region
          %s2428 = smul.u32 16, %s23
          %s2430 = ssub.s32 2048, 2048
          %2431 = vsyncadd %s2421, %s2430
          %s2432 = smul.addr %s2428, 128
          %s2433 = scalar_lea.hbm %s4, %s2432
          %s2434 = sshll.u32 %s2424, 4
          %s2435 = int_to_ptr.vmem [resolvable:$true] %s2434
          %2440 = dma.vmem_to_hbm [thread:$0]  %s2435, 2048, %s2433, %s2421, 128, 128, 8
        $region48: #{tpu_custom_call.1} parent=35 // pred_fallthru
          _
      $region36: #{tpu_custom_call.1} parent=5 // pred_fallthru
        _
      %p2441 = scmp.le.s32.totalorder 2, %s18
      // Predicated region
      $region49: #{tpu_custom_call.1} parent=5 // pred_check
        %p2442 = pneg %p2441
      $region50: #{tpu_custom_call.1} parent=5 // pred_check_branch
        %2444 = sbr.rel (%p2442) target = $region52
      $region51: #{tpu_custom_call.1} parent=5 // pred_region
        %s2445 = ssub.s32 %s18, 2
        // Predicated region
        $region53: #{tpu_custom_call.1} parent=51 // pred_check
          %p2446 = pneg %p136
        $region54: #{tpu_custom_call.1} parent=51 // pred_check_branch
          %2448 = sbr.rel (%p2446) target = $region56
        $region55: #{tpu_custom_call.1} parent=51 // pred_region
          %s2449 = sand.u32 %s121, 1
          %s2450 = scalar_lea.sflag [#allocation5], %s2449
          %s2451 = sand.u32 %s121, 1
          %s2452 = smul.addr %s2451, 128
          %s2453 = scalar_lea.vmem [#allocation8], %s2452
          %2454 = dma.done %s2450, 2048
        $region56: #{tpu_custom_call.1} parent=51 // pred_fallthru
          _
      $region52: #{tpu_custom_call.1} parent=5 // pred_fallthru
        _
    $region6: #{tpu_custom_call.1} parent=1 // loop_footer
      %s22 = sadd.s32 1, %s18
    $region7: #{tpu_custom_call.1} parent=1 // loop_footer_branch
      %17 = sbr.rel target = $region3
    $region8: #{tpu_custom_call.1} parent=1 // loop_exit
      _
    %2455 = vsyncpa [#allocation4], 1
    %s2456 = scalar_lea.sflag [#allocation4], 1
    %2457 = vsyncpa %s2456, 1
    %2458 = vsyncpa [#allocation7], 1
    %2459 = vsyncpa [#allocation5], 1
    %s2460 = scalar_lea.sflag [#allocation5], 1
    %2461 = vsyncpa %s2460, 1

</llo_original>
